<compile_context>
chip_gen: v7x
topology: tpu7x:2x2x1
jax: 0.10.0
libtpu: 0.0.40
codegen_flags: <defaults>
</compile_context>

<pallas_src>
import jax
import jax.numpy as jnp
from jax.experimental import pallas as pl
from jax.experimental.pallas import tpu as pltpu

# ----------------------------- shapes ---------------------------------------
B = 2            # batch
D_IN = 1024      # input_size
D_HID = 128      # hidden_size
D_EMB = 32       # embedding_size
N_HIDDEN = 5     # number of Linear(hidden, hidden) layers in the Sequential
LANE = 128       # TPU lane width (output padded to a multiple of this)


# --------------------------- Pallas kernel ----------------------------------
def embedding_net_kernel(x_ref, w_in_ref, w_hid_ref, w_out_ref,
                         b_hid_ref, b_out_ref, o_ref):
    """Fused 7-layer MLP: bf16 MXU matmuls with f32 accumulate, f32 epilogue."""
    n_hidden = w_hid_ref.shape[0]
    b_hid = b_hid_ref[...]                                   # (n_hidden+1, H) f32

    # Layer 0: (TB, D_IN) @ (D_IN, H)
    h = jnp.dot(x_ref[...].astype(jnp.bfloat16), w_in_ref[...],
                preferred_element_type=jnp.float32)          # MXU, f32 acc
    h = jnp.maximum(h + b_hid[0:1, :], 0.0)                  # bias + ReLU (f32 VPU)

    # Hidden layers (static unroll over the stacked (n_hidden, H, H) weights).
    for l in range(n_hidden):
        h = jnp.dot(h.astype(jnp.bfloat16), w_hid_ref[l],
                    preferred_element_type=jnp.float32)
        h = jnp.maximum(h + b_hid[l + 1:l + 2, :], 0.0)

    # Output layer (no ReLU); weights/bias are lane-padded -> unmasked store.
    h = jnp.dot(h.astype(jnp.bfloat16), w_out_ref[...],
                preferred_element_type=jnp.float32)
    o_ref[...] = (h + b_out_ref[...]).astype(o_ref.dtype)


# ----------------------- one-time parameter prep -----------------------------
def prepare_params(params):
    """Do the bf16 cast / stacking / lane padding ONCE, outside the forward."""
    (w0, b0) = params[0]
    hidden = params[1:-1]
    (w_last, b_last) = params[-1]

    d_emb = w_last.shape[1]
    d_out = int(pl.cdiv(d_emb, LANE)) * LANE                 # lane-dense output

    w_in = jnp.asarray(w0, jnp.bfloat16)                                     # (D_IN, H)
    w_hid = jnp.stack([jnp.asarray(w, jnp.bfloat16) for (w, _) in hidden])   # (5, H, H)
    b_hid = jnp.stack([jnp.asarray(b0, jnp.float32)]
                      + [jnp.asarray(b, jnp.float32) for (_, b) in hidden])  # (6, H)

    w_out = jnp.zeros((w_last.shape[0], d_out), jnp.bfloat16)
    w_out = w_out.at[:, :d_emb].set(jnp.asarray(w_last, jnp.bfloat16))       # (H, 128)
    b_out = jnp.zeros((1, d_out), jnp.float32)
    b_out = b_out.at[:, :d_emb].set(jnp.asarray(b_last, jnp.float32))        # (1, 128)

    return {"w_in": w_in, "w_hid": w_hid, "w_out": w_out,
            "b_hid": b_hid, "b_out": b_out}


# --------------------------- pallas_call wrapper ------------------------------
def _embedding_net_call(x2d, prepared, *, tb=256):
    """Single fused pallas_call; batch tiled (and 'parallel') when B > tb."""
    b, d_in = x2d.shape
    w_in, w_hid, w_out = prepared["w_in"], prepared["w_hid"], prepared["w_out"]
    b_hid, b_out = prepared["b_hid"], prepared["b_out"]
    d_out = w_out.shape[1]

    if b <= tb:
        tb_eff = b                                 # one full-batch tile (no pad)
        b_pad = b
    else:
        tb_eff = tb                                # multiple of 8 (f32 sublanes)
        b_pad = int(pl.cdiv(b, tb_eff)) * tb_eff
        if b_pad != b:
            x2d = jnp.pad(x2d, ((0, b_pad - b), (0, 0)))
    grid = (b_pad // tb_eff,)

    flops = 2 * b_pad * (w_in.shape[0] * w_in.shape[1]
                         + w_hid.shape[0] * w_hid.shape[1] * w_hid.shape[2]
                         + w_out.shape[0] * w_out.shape[1])
    bytes_accessed = (x2d.size * x2d.dtype.itemsize
                      + sum(a.size * a.dtype.itemsize
                            for a in (w_in, w_hid, w_out, b_hid, b_out))
                      + b_pad * d_out * 4)

    const2 = lambda i: (0, 0)       # weights stay VMEM-resident across batch tiles
    const3 = lambda i: (0, 0, 0)

    return pl.pallas_call(
        embedding_net_kernel,
        out_shape=jax.ShapeDtypeStruct((b_pad, d_out), jnp.float32),
        grid_spec=pl.GridSpec(
            grid=grid,
            in_specs=[
                pl.BlockSpec((tb_eff, d_in), lambda i: (i, 0)),   # x tile
                pl.BlockSpec(w_in.shape, const2),                 # (D_IN, H) bf16
                pl.BlockSpec(w_hid.shape, const3),                # (5, H, H) bf16
                pl.BlockSpec(w_out.shape, const2),                # (H, 128) bf16
                pl.BlockSpec(b_hid.shape, const2),                # (6, H) f32
                pl.BlockSpec(b_out.shape, const2),                # (1, 128) f32
            ],
            out_specs=pl.BlockSpec((tb_eff, d_out), lambda i: (i, 0)),
        ),
        compiler_params=pltpu.CompilerParams(
            dimension_semantics=("parallel",)),                   # megacore batch split
        cost_estimate=pl.CostEstimate(
            flops=flops, transcendentals=0, bytes_accessed=bytes_accessed),
    )(x2d, w_in, w_hid, w_out, b_hid, b_out)


# ----------------------------- forward --------------------------------------
def embedding_net_forward(x, prepared, *, d_emb=D_EMB, tb=256):
    """Equivalent of EmbeddingNet.forward: x.float() -> fc(x)."""
    x = x.astype(jnp.float32)                     # torch x.float()
    lead, d_in = x.shape[:-1], x.shape[-1]
    x2d = x.reshape(-1, d_in)
    out = _embedding_net_call(x2d, prepared, tb=tb)
    out = out[:x2d.shape[0], :d_emb]              # drop batch pad + lane pad
    return out.reshape(*lead, d_emb)


def get_embedding(x, prepared, *, d_emb=D_EMB, tb=256):
    return embedding_net_forward(x, prepared, d_emb=d_emb, tb=tb)


# ----------------------------- params ---------------------------------------
def init_params(key, input_size=D_IN, hidden_size=D_HID,
                embedding_size=D_EMB, n_hidden=N_HIDDEN):
    """nn.Linear-style uniform(-1/sqrt(fan_in), 1/sqrt(fan_in)) init."""
    dims = [input_size] + [hidden_size] * (n_hidden + 1) + [embedding_size]
    keys = jax.random.split(key, len(dims) - 1)
    params = []
    for k, (din, dout) in zip(keys, zip(dims[:-1], dims[1:])):
        kw, kb = jax.random.split(k)
        bound = 1.0 / (din ** 0.5)
        w = jax.random.uniform(kw, (din, dout), jnp.float32, -bound, bound)
        bb = jax.random.uniform(kb, (dout,), jnp.float32, -bound, bound)
        params.append((w, bb))
    return params


# --------------------------- reference (pure JAX) ----------------------------
def _ref_forward(x, params, matmul_dtype=jnp.float32):
    h = x.astype(jnp.float32)
    n = len(params)
    for i, (w, bb) in enumerate(params):
        h = jnp.dot(h.astype(matmul_dtype), w.astype(matmul_dtype),
                    preferred_element_type=jnp.float32) + bb
        if i < n - 1:
            h = jnp.maximum(h, 0.0)
    return h


if __name__ == "__main__":
    key = jax.random.PRNGKey(0)
    kx, kp = jax.random.split(key)

    x = jax.random.normal(kx, (B, D_IN), jnp.float32)
    params = init_params(kp)
    prepared = prepare_params(params)       # one-time bf16 cast / stack / pad

    fwd = jax.jit(embedding_net_forward, static_argnames=("d_emb", "tb"))
    out = fwd(x, prepared)
    jax.block_until_ready(out)
    assert out.shape == (B, D_EMB)

    # Tight check against a reference with matching bf16-matmul / f32-accumulate numerics.
    ref_bf16 = _ref_forward(x, params, matmul_dtype=jnp.bfloat16)
    assert jnp.allclose(out, ref_bf16, atol=5e-3, rtol=5e-3), (
        float(jnp.max(jnp.abs(out - ref_bf16))))

    # Loose sanity check against the pure-f32 reference (bf16 weight rounding).
    ref_f32 = _ref_forward(x, params, matmul_dtype=jnp.float32)
    assert jnp.allclose(out, ref_f32, atol=1e-1, rtol=1e-1), (
        float(jnp.max(jnp.abs(out - ref_f32))))

    # Exercise the batch-tiled path too (grid > 1, padded batch, parallel axis).
    xb = jax.random.normal(jax.random.PRNGKey(1), (300, D_IN), jnp.float32)
    outb = fwd(xb, prepared, tb=128)
    jax.block_until_ready(outb)
    assert outb.shape == (300, D_EMB)
    refb = _ref_forward(xb, params, matmul_dtype=jnp.bfloat16)
    assert jnp.allclose(outb, refb, atol=5e-3, rtol=5e-3), (
        float(jnp.max(jnp.abs(outb - refb))))

    print("KERNEL_OK")
</pallas_src>

<mosaic_0001>
module attributes {stable_mosaic.version = 11 : i64} {
  func.func @embedding_net_kernel(%arg0: i32, %arg1: memref<2x1024xf32, #tpu.memory_space<vmem>>, %arg2: memref<1024x128xbf16, #tpu.memory_space<vmem>>, %arg3: memref<5x128x128xbf16, #tpu.memory_space<vmem>>, %arg4: memref<128x128xbf16, #tpu.memory_space<vmem>>, %arg5: memref<6x128xf32, #tpu.memory_space<vmem>>, %arg6: memref<1x128xf32, #tpu.memory_space<vmem>>, %arg7: memref<2x128xf32, #tpu.memory_space<vmem>>) attributes {dimension_semantics = [#tpu.dimension_semantics<parallel>], iteration_bounds = array<i64: 1>, scalar_prefetch = 0 : i64, scratch_operands = 0 : i64, tpu.core_type = #tpu.core_type<tc>, window_params = [{transform_indices = @transform_0, window_bounds = array<i64: 2, 1024>}, {pipeline_mode = #tpu.pipeline_mode<synchronous>, transform_indices = @transform_1, window_bounds = array<i64: 1024, 128>}, {pipeline_mode = #tpu.pipeline_mode<synchronous>, transform_indices = @transform_2, window_bounds = array<i64: 5, 128, 128>}, {pipeline_mode = #tpu.pipeline_mode<synchronous>, transform_indices = @transform_3, window_bounds = array<i64: 128, 128>}, {pipeline_mode = #tpu.pipeline_mode<synchronous>, transform_indices = @transform_4, window_bounds = array<i64: 6, 128>}, {pipeline_mode = #tpu.pipeline_mode<synchronous>, transform_indices = @transform_5, window_bounds = array<i64: 1, 128>}, {transform_indices = @transform_6, window_bounds = array<i64: 2, 128>}]} {
    %c0 = arith.constant 0 : index
    %c0_0 = arith.constant 0 : index
    %0 = vector.load %arg5[%c0, %c0_0] : memref<6x128xf32, #tpu.memory_space<vmem>>, vector<6x128xf32>
    %c0_1 = arith.constant 0 : index
    %c0_2 = arith.constant 0 : index
    %1 = vector.load %arg1[%c0_1, %c0_2] : memref<2x1024xf32, #tpu.memory_space<vmem>>, vector<2x1024xf32>
    %2 = arith.truncf %1 : vector<2x1024xf32> to vector<2x1024xbf16>
    %c0_3 = arith.constant 0 : index
    %c0_4 = arith.constant 0 : index
    %3 = vector.load %arg2[%c0_3, %c0_4] : memref<1024x128xbf16, #tpu.memory_space<vmem>>, vector<1024x128xbf16>
    %cst = arith.constant dense<0.000000e+00> : vector<2x128xf32>
    %4 = tpu.matmul %2, %3, %cst {dimension_numbers = #tpu.dot_dimension_numbers<[1], [0], [0], [1], [0, 0, 1, 1], [], []>} : vector<2x1024xbf16>, vector<1024x128xbf16>, vector<2x128xf32> -> vector<2x128xf32>
    %5 = vector.extract_strided_slice %0 {offsets = [0, 0], sizes = [1, 128], strides = [1, 1]} : vector<6x128xf32> to vector<1x128xf32>
    %6 = vector.broadcast %5 : vector<1x128xf32> to vector<2x128xf32>
    %7 = arith.addf %4, %6 : vector<2x128xf32>
    %cst_5 = arith.constant 0.000000e+00 : f32
    %8 = vector.broadcast %cst_5 : f32 to vector<2x128xf32>
    %9 = arith.maximumf %7, %8 : vector<2x128xf32>
    %10 = arith.truncf %9 : vector<2x128xf32> to vector<2x128xbf16>
    %c0_6 = arith.constant 0 : index
    %c0_7 = arith.constant 0 : index
    %c0_8 = arith.constant 0 : index
    %11 = vector.load %arg3[%c0_6, %c0_7, %c0_8] : memref<5x128x128xbf16, #tpu.memory_space<vmem>>, vector<1x128x128xbf16>
    %12 = vector.shape_cast %11 : vector<1x128x128xbf16> to vector<128x128xbf16>
    %cst_9 = arith.constant dense<0.000000e+00> : vector<2x128xf32>
    %13 = tpu.matmul %10, %12, %cst_9 {dimension_numbers = #tpu.dot_dimension_numbers<[1], [0], [0], [1], [0, 0, 1, 1], [], []>} : vector<2x128xbf16>, vector<128x128xbf16>, vector<2x128xf32> -> vector<2x128xf32>
    %14 = vector.extract_strided_slice %0 {offsets = [1, 0], sizes = [1, 128], strides = [1, 1]} : vector<6x128xf32> to vector<1x128xf32>
    %15 = vector.broadcast %14 : vector<1x128xf32> to vector<2x128xf32>
    %16 = arith.addf %13, %15 : vector<2x128xf32>
    %cst_10 = arith.constant 0.000000e+00 : f32
    %17 = vector.broadcast %cst_10 : f32 to vector<2x128xf32>
    %18 = arith.maximumf %16, %17 : vector<2x128xf32>
    %19 = arith.truncf %18 : vector<2x128xf32> to vector<2x128xbf16>
    %c1 = arith.constant 1 : index
    %c0_11 = arith.constant 0 : index
    %c0_12 = arith.constant 0 : index
    %20 = vector.load %arg3[%c1, %c0_11, %c0_12] : memref<5x128x128xbf16, #tpu.memory_space<vmem>>, vector<1x128x128xbf16>
    %21 = vector.shape_cast %20 : vector<1x128x128xbf16> to vector<128x128xbf16>
    %cst_13 = arith.constant dense<0.000000e+00> : vector<2x128xf32>
    %22 = tpu.matmul %19, %21, %cst_13 {dimension_numbers = #tpu.dot_dimension_numbers<[1], [0], [0], [1], [0, 0, 1, 1], [], []>} : vector<2x128xbf16>, vector<128x128xbf16>, vector<2x128xf32> -> vector<2x128xf32>
    %23 = vector.extract_strided_slice %0 {offsets = [2, 0], sizes = [1, 128], strides = [1, 1]} : vector<6x128xf32> to vector<1x128xf32>
    %24 = vector.broadcast %23 : vector<1x128xf32> to vector<2x128xf32>
    %25 = arith.addf %22, %24 : vector<2x128xf32>
    %cst_14 = arith.constant 0.000000e+00 : f32
    %26 = vector.broadcast %cst_14 : f32 to vector<2x128xf32>
    %27 = arith.maximumf %25, %26 : vector<2x128xf32>
    %28 = arith.truncf %27 : vector<2x128xf32> to vector<2x128xbf16>
    %c2 = arith.constant 2 : index
    %c0_15 = arith.constant 0 : index
    %c0_16 = arith.constant 0 : index
    %29 = vector.load %arg3[%c2, %c0_15, %c0_16] : memref<5x128x128xbf16, #tpu.memory_space<vmem>>, vector<1x128x128xbf16>
    %30 = vector.shape_cast %29 : vector<1x128x128xbf16> to vector<128x128xbf16>
    %cst_17 = arith.constant dense<0.000000e+00> : vector<2x128xf32>
    %31 = tpu.matmul %28, %30, %cst_17 {dimension_numbers = #tpu.dot_dimension_numbers<[1], [0], [0], [1], [0, 0, 1, 1], [], []>} : vector<2x128xbf16>, vector<128x128xbf16>, vector<2x128xf32> -> vector<2x128xf32>
    %32 = vector.extract_strided_slice %0 {offsets = [3, 0], sizes = [1, 128], strides = [1, 1]} : vector<6x128xf32> to vector<1x128xf32>
    %33 = vector.broadcast %32 : vector<1x128xf32> to vector<2x128xf32>
    %34 = arith.addf %31, %33 : vector<2x128xf32>
    %cst_18 = arith.constant 0.000000e+00 : f32
    %35 = vector.broadcast %cst_18 : f32 to vector<2x128xf32>
    %36 = arith.maximumf %34, %35 : vector<2x128xf32>
    %37 = arith.truncf %36 : vector<2x128xf32> to vector<2x128xbf16>
    %c3 = arith.constant 3 : index
    %c0_19 = arith.constant 0 : index
    %c0_20 = arith.constant 0 : index
    %38 = vector.load %arg3[%c3, %c0_19, %c0_20] : memref<5x128x128xbf16, #tpu.memory_space<vmem>>, vector<1x128x128xbf16>
    %39 = vector.shape_cast %38 : vector<1x128x128xbf16> to vector<128x128xbf16>
    %cst_21 = arith.constant dense<0.000000e+00> : vector<2x128xf32>
    %40 = tpu.matmul %37, %39, %cst_21 {dimension_numbers = #tpu.dot_dimension_numbers<[1], [0], [0], [1], [0, 0, 1, 1], [], []>} : vector<2x128xbf16>, vector<128x128xbf16>, vector<2x128xf32> -> vector<2x128xf32>
    %41 = vector.extract_strided_slice %0 {offsets = [4, 0], sizes = [1, 128], strides = [1, 1]} : vector<6x128xf32> to vector<1x128xf32>
    %42 = vector.broadcast %41 : vector<1x128xf32> to vector<2x128xf32>
    %43 = arith.addf %40, %42 : vector<2x128xf32>
    %cst_22 = arith.constant 0.000000e+00 : f32
    %44 = vector.broadcast %cst_22 : f32 to vector<2x128xf32>
    %45 = arith.maximumf %43, %44 : vector<2x128xf32>
    %46 = arith.truncf %45 : vector<2x128xf32> to vector<2x128xbf16>
    %c4 = arith.constant 4 : index
    %c0_23 = arith.constant 0 : index
    %c0_24 = arith.constant 0 : index
    %47 = vector.load %arg3[%c4, %c0_23, %c0_24] : memref<5x128x128xbf16, #tpu.memory_space<vmem>>, vector<1x128x128xbf16>
    %48 = vector.shape_cast %47 : vector<1x128x128xbf16> to vector<128x128xbf16>
    %cst_25 = arith.constant dense<0.000000e+00> : vector<2x128xf32>
    %49 = tpu.matmul %46, %48, %cst_25 {dimension_numbers = #tpu.dot_dimension_numbers<[1], [0], [0], [1], [0, 0, 1, 1], [], []>} : vector<2x128xbf16>, vector<128x128xbf16>, vector<2x128xf32> -> vector<2x128xf32>
    %50 = vector.extract_strided_slice %0 {offsets = [5, 0], sizes = [1, 128], strides = [1, 1]} : vector<6x128xf32> to vector<1x128xf32>
    %51 = vector.broadcast %50 : vector<1x128xf32> to vector<2x128xf32>
    %52 = arith.addf %49, %51 : vector<2x128xf32>
    %cst_26 = arith.constant 0.000000e+00 : f32
    %53 = vector.broadcast %cst_26 : f32 to vector<2x128xf32>
    %54 = arith.maximumf %52, %53 : vector<2x128xf32>
    %55 = arith.truncf %54 : vector<2x128xf32> to vector<2x128xbf16>
    %c0_27 = arith.constant 0 : index
    %c0_28 = arith.constant 0 : index
    %56 = vector.load %arg4[%c0_27, %c0_28] : memref<128x128xbf16, #tpu.memory_space<vmem>>, vector<128x128xbf16>
    %cst_29 = arith.constant dense<0.000000e+00> : vector<2x128xf32>
    %57 = tpu.matmul %55, %56, %cst_29 {dimension_numbers = #tpu.dot_dimension_numbers<[1], [0], [0], [1], [0, 0, 1, 1], [], []>} : vector<2x128xbf16>, vector<128x128xbf16>, vector<2x128xf32> -> vector<2x128xf32>
    %c0_30 = arith.constant 0 : index
    %c0_31 = arith.constant 0 : index
    %58 = vector.load %arg6[%c0_30, %c0_31] : memref<1x128xf32, #tpu.memory_space<vmem>>, vector<1x128xf32>
    %59 = vector.broadcast %58 : vector<1x128xf32> to vector<2x128xf32>
    %60 = arith.addf %57, %59 : vector<2x128xf32>
    %c0_32 = arith.constant 0 : index
    %c0_33 = arith.constant 0 : index
    %61 = vector.load %arg7[%c0_32, %c0_33] : memref<2x128xf32, #tpu.memory_space<vmem>>, vector<2x128xf32>
    tpu.vector_store %arg7[%c0_32, %c0_33], %60 {strides = array<i32>} : memref<2x128xf32, #tpu.memory_space<vmem>>, vector<2x128xf32>,
    return
  }
  func.func @transform_0(%arg0: i32) -> (i32, i32) {
    %c0_i32 = arith.constant 0 : i32
    %c0_i32_0 = arith.constant 0 : i32
    return %arg0, %c0_i32 : i32, i32
  }
  func.func @transform_1(%arg0: i32) -> (i32, i32) {
    %c0_i32 = arith.constant 0 : i32
    %c0_i32_0 = arith.constant 0 : i32
    %c0_i32_1 = arith.constant 0 : i32
    return %c0_i32, %c0_i32_0 : i32, i32
  }
  func.func @transform_2(%arg0: i32) -> (i32, i32, i32) {
    %c0_i32 = arith.constant 0 : i32
    %c0_i32_0 = arith.constant 0 : i32
    %c0_i32_1 = arith.constant 0 : i32
    %c0_i32_2 = arith.constant 0 : i32
    return %c0_i32, %c0_i32_0, %c0_i32_1 : i32, i32, i32
  }
  func.func @transform_3(%arg0: i32) -> (i32, i32) {
    %c0_i32 = arith.constant 0 : i32
    %c0_i32_0 = arith.constant 0 : i32
    %c0_i32_1 = arith.constant 0 : i32
    return %c0_i32, %c0_i32_0 : i32, i32
  }
  func.func @transform_4(%arg0: i32) -> (i32, i32) {
    %c0_i32 = arith.constant 0 : i32
    %c0_i32_0 = arith.constant 0 : i32
    %c0_i32_1 = arith.constant 0 : i32
    return %c0_i32, %c0_i32_0 : i32, i32
  }
  func.func @transform_5(%arg0: i32) -> (i32, i32) {
    %c0_i32 = arith.constant 0 : i32
    %c0_i32_0 = arith.constant 0 : i32
    %c0_i32_1 = arith.constant 0 : i32
    return %c0_i32, %c0_i32_0 : i32, i32
  }
  func.func @transform_6(%arg0: i32) -> (i32, i32) {
    %c0_i32 = arith.constant 0 : i32
    %c0_i32_0 = arith.constant 0 : i32
    return %arg0, %c0_i32 : i32, i32
  }
}

</mosaic_0001>

<llo_original>
// kernel: embedding_net_forward.1
$region0: #{embedding_net_forward.1}
  #allocation0 [shape = 'u32[]', space=smem, size = 0x4, offset = 0x4, fixed_abs, tag = 'smem constant byte address 0x4 - core index']
  #allocation1 [shape = 'u32[144,128]{1,0:T(1,128)}', space=vmem, size = 0x12000, scoped, tag = 'internal scratch']
  %s0 = inlined_call_operand.hbm [shape: f32[2,1024], index: 0, kind: input, shape index: {}]
  %s1 = inlined_call_operand.hbm [shape: bf16[1024,128], index: 1, kind: input, shape index: {}]
  %s2 = inlined_call_operand.hbm [shape: bf16[5,128,128], index: 2, kind: input, shape index: {}]
  %s3 = inlined_call_operand.hbm [shape: bf16[128,128], index: 3, kind: input, shape index: {}]
  %s4 = inlined_call_operand.hbm [shape: f32[6,128], index: 4, kind: input, shape index: {}]
  %s5 = inlined_call_operand.vmem [shape: f32[1,128], index: 5, kind: input, shape index: {}]
  %s6 = inlined_call_operand.hbm [shape: f32[2,128], index: 6, kind: output, shape index: {}]
  %s7 = sld [smem:[#allocation0]]
  $region54: #{embedding_net_forward.1} parent=0
    _
  %s9 = ssub.s32 1, %s7
  %s10 = scalar_select 0, %s9, %s7
  $region1: #{embedding_net_forward.1} parent=0
    #allocation2 [shape = 'u8[8192]{0}', space=vmem, size = 0x2000, scoped, tag = 'input window, operand 0, single buffered']
    #allocation3 [shape = 's32[1]{0}', space=sflag, size = 0x4, scoped, tag = 'scoped memory for embedding_net_forward.1']
    #allocation4 [shape = 's32[1]{0}', space=sflag, size = 0x4, scoped, tag = 'scoped memory for embedding_net_forward.1']
    #allocation5 [shape = 'u8[262144]{0}', space=vmem, size = 0x40000, scoped, tag = 'input window, operand 1, single buffered']
    #allocation6 [shape = 's32[1]{0}', space=sflag, size = 0x4, scoped, tag = 'scoped memory for embedding_net_forward.1']
    #allocation7 [shape = 'u8[163840]{0}', space=vmem, size = 0x28000, scoped, tag = 'input window, operand 2, single buffered']
    #allocation8 [shape = 'u8[32768]{0}', space=vmem, size = 0x8000, scoped, tag = 'input window, operand 3, single buffered']
    #allocation9 [shape = 's32[1]{0}', space=sflag, size = 0x4, scoped, tag = 'scoped memory for embedding_net_forward.1']
    #allocation10 [shape = 'u8[4096]{0}', space=vmem, size = 0x1000, scoped, tag = 'input window, operand 4, single buffered']
    #allocation11 [shape = 'u8[1024]{0}', space=vmem, size = 0x400, scoped, tag = 'output window, operand 0, single buffered']
    %11 = vsyncpa [#allocation3], 0
    %12 = vsyncpa [#allocation6], 0
    %13 = vsyncpa [#allocation9], 0
    %14 = vsyncpa [#allocation4], 0
    // Predicated region
    $region2: #{embedding_net_forward.1} parent=1 // pred_check
      _
    $region3: #{embedding_net_forward.1} parent=1 // pred_check_branch
      %16 = sbr.rel (0) target = $region5
    $region4: #{embedding_net_forward.1} parent=1 // pred_region
      %s18 = ssub.s32 256, 256
      %19 = vsyncadd [#allocation3], %s18
      %s21 = sshll.u32 [#allocation2], 4
      %s22 = int_to_ptr.vmem [resolvable:$true] %s21
      %24 = dma.hbm_to_vmem [thread:$0]  %s0, 256, %s22, [#allocation3]
    $region5: #{embedding_net_forward.1} parent=1 // pred_fallthru
      _
    // Predicated region
    $region6: #{embedding_net_forward.1} parent=1 // pred_check
      _
    $region7: #{embedding_net_forward.1} parent=1 // pred_check_branch
      %26 = sbr.rel (0) target = $region9
    $region8: #{embedding_net_forward.1} parent=1 // pred_region
      %s28 = ssub.s32 8192, 8192
      %29 = vsyncadd [#allocation6], %s28
      %s30 = sshll.u32 [#allocation5], 4
      %s31 = int_to_ptr.vmem [resolvable:$true] %s30
      %36 = dma.hbm_to_vmem [thread:$0]  %s1, 8192, %s31, [#allocation6], 64, 64, 4
    $region9: #{embedding_net_forward.1} parent=1 // pred_fallthru
      _
    // Predicated region
    $region10: #{embedding_net_forward.1} parent=1 // pred_check
      _
    $region11: #{embedding_net_forward.1} parent=1 // pred_check_branch
      %38 = sbr.rel (0) target = $region13
    $region12: #{embedding_net_forward.1} parent=1 // pred_region
      %s40 = ssub.s32 5120, 5120
      %41 = vsyncadd [#allocation6], %s40
      %s42 = sshll.u32 [#allocation7], 4
      %s43 = int_to_ptr.vmem [resolvable:$true] %s42
      %48 = dma.hbm_to_vmem [thread:$0]  %s2, 5120, %s43, [#allocation6], 64, 64, 4
    $region13: #{embedding_net_forward.1} parent=1 // pred_fallthru
      _
    // Predicated region
    $region14: #{embedding_net_forward.1} parent=1 // pred_check
      _
    $region15: #{embedding_net_forward.1} parent=1 // pred_check_branch
      %50 = sbr.rel (0) target = $region17
    $region16: #{embedding_net_forward.1} parent=1 // pred_region
      %s52 = ssub.s32 1024, 1024
      %53 = vsyncadd [#allocation9], %s52
      %s54 = sshll.u32 [#allocation8], 4
      %s55 = int_to_ptr.vmem [resolvable:$true] %s54
      %60 = dma.hbm_to_vmem [thread:$0]  %s3, 1024, %s55, [#allocation9], 64, 64, 4
    $region17: #{embedding_net_forward.1} parent=1 // pred_fallthru
      _
    // Predicated region
    $region18: #{embedding_net_forward.1} parent=1 // pred_check
      _
    $region19: #{embedding_net_forward.1} parent=1 // pred_check_branch
      %62 = sbr.rel (0) target = $region21
    $region20: #{embedding_net_forward.1} parent=1 // pred_region
      %s64 = ssub.s32 128, 128
      %65 = vsyncadd [#allocation9], %s64
      %s67 = sshll.u32 [#allocation10], 4
      %s68 = int_to_ptr.vmem [resolvable:$true] %s67
      %70 = dma.hbm_to_vmem [thread:$0]  %s4, 128, %s68, [#allocation9]
    $region21: #{embedding_net_forward.1} parent=1 // pred_fallthru
      _
    // Predicated region
    $region22: #{embedding_net_forward.1} parent=1 // pred_check
      _
    $region23: #{embedding_net_forward.1} parent=1 // pred_check_branch
      %72 = sbr.rel (0) target = $region25
    $region24: #{embedding_net_forward.1} parent=1 // pred_region
      _
    $region25: #{embedding_net_forward.1} parent=1 // pred_fallthru
      _
    // Predicated region
    $region26: #{embedding_net_forward.1} parent=1 // pred_check
      _
    $region27: #{embedding_net_forward.1} parent=1 // pred_check_branch
      %74 = sbr.rel (0) target = $region29
    $region28: #{embedding_net_forward.1} parent=1 // pred_region
      %75 = dma.done [#allocation3], 256
    $region29: #{embedding_net_forward.1} parent=1 // pred_fallthru
      _
    // Predicated region
    $region30: #{embedding_net_forward.1} parent=1 // pred_check
      _
    $region31: #{embedding_net_forward.1} parent=1 // pred_check_branch
      %77 = sbr.rel (0) target = $region33
    $region32: #{embedding_net_forward.1} parent=1 // pred_region
      %78 = dma.done [#allocation6], 8192
    $region33: #{embedding_net_forward.1} parent=1 // pred_fallthru
      _
    // Predicated region
    $region34: #{embedding_net_forward.1} parent=1 // pred_check
      _
    $region35: #{embedding_net_forward.1} parent=1 // pred_check_branch
      %80 = sbr.rel (0) target = $region37
    $region36: #{embedding_net_forward.1} parent=1 // pred_region
      %81 = dma.done [#allocation6], 5120
    $region37: #{embedding_net_forward.1} parent=1 // pred_fallthru
      _
    // Predicated region
    $region38: #{embedding_net_forward.1} parent=1 // pred_check
      _
    $region39: #{embedding_net_forward.1} parent=1 // pred_check_branch
      %83 = sbr.rel (0) target = $region41
    $region40: #{embedding_net_forward.1} parent=1 // pred_region
      %84 = dma.done [#allocation9], 1024
    $region41: #{embedding_net_forward.1} parent=1 // pred_fallthru
      _
    // Predicated region
    $region42: #{embedding_net_forward.1} parent=1 // pred_check
      _
    $region43: #{embedding_net_forward.1} parent=1 // pred_check_branch
      %86 = sbr.rel (0) target = $region45
    $region44: #{embedding_net_forward.1} parent=1 // pred_region
      %87 = dma.done [#allocation9], 128
    $region45: #{embedding_net_forward.1} parent=1 // pred_fallthru
      _
    %v89 = vld [vmem:[#allocation10] sm:$0x3f]
    %v90 = vld [vmem:[#allocation2] sm:$0xff]
    %v91 = vld [vmem:[#allocation2 + $0x8] sm:$0xff]
    %v94 = vcombine.high %v90, %v90
    %v96 = vunpack.c.l.s4 1983009808
    %v97 = vunpack.c.0.s8 %v96
    %v98 = vlaneseq
    %v99 = vshrl.u32 %v98, 7
    %v100 = vsub.s32 %v97, %v99
    %v101 = vrot.slane %v90, %v100
    %v103 = vunpack.c.l.s4 1983009808
    %v104 = vunpack.c.0.s8 %v103
    %v105 = vlaneseq
    %v106 = vshrl.u32 %v105, 7
    %v107 = vsub.s32 %v104, %v106
    %v108 = vrot.slane %v94, %v107
    %v109 = vcombine.high %v101, %v101
    %v110 = vcombine.high %v108, %v108
    %v111 = vcombine.high %v91, %v91
    %v113 = vunpack.c.l.s4 1983009808
    %v114 = vunpack.c.0.s8 %v113
    %v115 = vlaneseq
    %v116 = vshrl.u32 %v115, 7
    %v117 = vsub.s32 %v114, %v116
    %v118 = vrot.slane %v91, %v117
    %v120 = vunpack.c.l.s4 1983009808
    %v121 = vunpack.c.0.s8 %v120
    %v122 = vlaneseq
    %v123 = vshrl.u32 %v122, 7
    %v124 = vsub.s32 %v121, %v123
    %v125 = vrot.slane %v111, %v124
    %v126 = vcombine.high %v118, %v118
    %v127 = vcombine.high %v125, %v125
    %v136 = vpack.c.bf16 %v101, %v101
    %v137 = vpack.c.bf16 %v109, %v109
    %v138 = vpack.c.bf16 %v108, %v108
    %v139 = vpack.c.bf16 %v110, %v110
    %v140 = vpack.c.bf16 %v118, %v118
    %v141 = vpack.c.bf16 %v126, %v126
    %v142 = vpack.c.bf16 %v125, %v125
    %v143 = vpack.c.bf16 %v127, %v127
    %v144 = vld [vmem:[#allocation5] sm:$0xf]
    %v145 = vld [vmem:[#allocation5 + $0x4] sm:$0xf]
    %v146 = vld [vmem:[#allocation5 + $0x8] sm:$0xf]
    %v147 = vld [vmem:[#allocation5 + $0xc] sm:$0xf]
    %v148 = vld [vmem:[#allocation5 + $0x10] sm:$0xf]
    %v149 = vld [vmem:[#allocation5 + $0x14] sm:$0xf]
    %v150 = vld [vmem:[#allocation5 + $0x18] sm:$0xf]
    %v151 = vld [vmem:[#allocation5 + $0x1c] sm:$0xf]
    %v152 = vld [vmem:[#allocation5 + $0x20] sm:$0xf]
    %v153 = vld [vmem:[#allocation5 + $0x24] sm:$0xf]
    %v154 = vld [vmem:[#allocation5 + $0x28] sm:$0xf]
    %v155 = vld [vmem:[#allocation5 + $0x2c] sm:$0xf]
    %v156 = vld [vmem:[#allocation5 + $0x30] sm:$0xf]
    %v157 = vld [vmem:[#allocation5 + $0x34] sm:$0xf]
    %v158 = vld [vmem:[#allocation5 + $0x38] sm:$0xf]
    %v159 = vld [vmem:[#allocation5 + $0x3c] sm:$0xf]
    %v160 = vld [vmem:[#allocation5 + $0x40] sm:$0xf]
    %v161 = vld [vmem:[#allocation5 + $0x44] sm:$0xf]
    %v162 = vld [vmem:[#allocation5 + $0x48] sm:$0xf]
    %v163 = vld [vmem:[#allocation5 + $0x4c] sm:$0xf]
    %v164 = vld [vmem:[#allocation5 + $0x50] sm:$0xf]
    %v165 = vld [vmem:[#allocation5 + $0x54] sm:$0xf]
    %v166 = vld [vmem:[#allocation5 + $0x58] sm:$0xf]
    %v167 = vld [vmem:[#allocation5 + $0x5c] sm:$0xf]
    %v168 = vld [vmem:[#allocation5 + $0x60] sm:$0xf]
    %v169 = vld [vmem:[#allocation5 + $0x64] sm:$0xf]
    %v170 = vld [vmem:[#allocation5 + $0x68] sm:$0xf]
    %v171 = vld [vmem:[#allocation5 + $0x6c] sm:$0xf]
    %v172 = vld [vmem:[#allocation5 + $0x70] sm:$0xf]
    %v173 = vld [vmem:[#allocation5 + $0x74] sm:$0xf]
    %v174 = vld [vmem:[#allocation5 + $0x78] sm:$0xf]
    %v175 = vld [vmem:[#allocation5 + $0x7c] sm:$0xf]
    %v176 = vld [vmem:[#allocation5 + $0x80] sm:$0xf]
    %v177 = vld [vmem:[#allocation5 + $0x84] sm:$0xf]
    %v178 = vld [vmem:[#allocation5 + $0x88] sm:$0xf]
    %v179 = vld [vmem:[#allocation5 + $0x8c] sm:$0xf]
    %v180 = vld [vmem:[#allocation5 + $0x90] sm:$0xf]
    %v181 = vld [vmem:[#allocation5 + $0x94] sm:$0xf]
    %v182 = vld [vmem:[#allocation5 + $0x98] sm:$0xf]
    %v183 = vld [vmem:[#allocation5 + $0x9c] sm:$0xf]
    %v184 = vld [vmem:[#allocation5 + $0xa0] sm:$0xf]
    %v185 = vld [vmem:[#allocation5 + $0xa4] sm:$0xf]
    %v186 = vld [vmem:[#allocation5 + $0xa8] sm:$0xf]
    %v187 = vld [vmem:[#allocation5 + $0xac] sm:$0xf]
    %v188 = vld [vmem:[#allocation5 + $0xb0] sm:$0xf]
    %v189 = vld [vmem:[#allocation5 + $0xb4] sm:$0xf]
    %v190 = vld [vmem:[#allocation5 + $0xb8] sm:$0xf]
    %v191 = vld [vmem:[#allocation5 + $0xbc] sm:$0xf]
    %v192 = vld [vmem:[#allocation5 + $0xc0] sm:$0xf]
    %v193 = vld [vmem:[#allocation5 + $0xc4] sm:$0xf]
    %v194 = vld [vmem:[#allocation5 + $0xc8] sm:$0xf]
    %v195 = vld [vmem:[#allocation5 + $0xcc] sm:$0xf]
    %v196 = vld [vmem:[#allocation5 + $0xd0] sm:$0xf]
    %v197 = vld [vmem:[#allocation5 + $0xd4] sm:$0xf]
    %v198 = vld [vmem:[#allocation5 + $0xd8] sm:$0xf]
    %v199 = vld [vmem:[#allocation5 + $0xdc] sm:$0xf]
    %v200 = vld [vmem:[#allocation5 + $0xe0] sm:$0xf]
    %v201 = vld [vmem:[#allocation5 + $0xe4] sm:$0xf]
    %v202 = vld [vmem:[#allocation5 + $0xe8] sm:$0xf]
    %v203 = vld [vmem:[#allocation5 + $0xec] sm:$0xf]
    %v204 = vld [vmem:[#allocation5 + $0xf0] sm:$0xf]
    %v205 = vld [vmem:[#allocation5 + $0xf4] sm:$0xf]
    %v206 = vld [vmem:[#allocation5 + $0xf8] sm:$0xf]
    %v207 = vld [vmem:[#allocation5 + $0xfc] sm:$0xf]
    %v208 = vld [vmem:[#allocation5 + $0x100] sm:$0xf]
    %v209 = vld [vmem:[#allocation5 + $0x104] sm:$0xf]
    %v210 = vld [vmem:[#allocation5 + $0x108] sm:$0xf]
    %v211 = vld [vmem:[#allocation5 + $0x10c] sm:$0xf]
    %v212 = vld [vmem:[#allocation5 + $0x110] sm:$0xf]
    %v213 = vld [vmem:[#allocation5 + $0x114] sm:$0xf]
    %v214 = vld [vmem:[#allocation5 + $0x118] sm:$0xf]
    %v215 = vld [vmem:[#allocation5 + $0x11c] sm:$0xf]
    %v216 = vld [vmem:[#allocation5 + $0x120] sm:$0xf]
    %v217 = vld [vmem:[#allocation5 + $0x124] sm:$0xf]
    %v218 = vld [vmem:[#allocation5 + $0x128] sm:$0xf]
    %v219 = vld [vmem:[#allocation5 + $0x12c] sm:$0xf]
    %v220 = vld [vmem:[#allocation5 + $0x130] sm:$0xf]
    %v221 = vld [vmem:[#allocation5 + $0x134] sm:$0xf]
    %v222 = vld [vmem:[#allocation5 + $0x138] sm:$0xf]
    %v223 = vld [vmem:[#allocation5 + $0x13c] sm:$0xf]
    %v224 = vld [vmem:[#allocation5 + $0x140] sm:$0xf]
    %v225 = vld [vmem:[#allocation5 + $0x144] sm:$0xf]
    %v226 = vld [vmem:[#allocation5 + $0x148] sm:$0xf]
    %v227 = vld [vmem:[#allocation5 + $0x14c] sm:$0xf]
    %v228 = vld [vmem:[#allocation5 + $0x150] sm:$0xf]
    %v229 = vld [vmem:[#allocation5 + $0x154] sm:$0xf]
    %v230 = vld [vmem:[#allocation5 + $0x158] sm:$0xf]
    %v231 = vld [vmem:[#allocation5 + $0x15c] sm:$0xf]
    %v232 = vld [vmem:[#allocation5 + $0x160] sm:$0xf]
    %v233 = vld [vmem:[#allocation5 + $0x164] sm:$0xf]
    %v234 = vld [vmem:[#allocation5 + $0x168] sm:$0xf]
    %v235 = vld [vmem:[#allocation5 + $0x16c] sm:$0xf]
    %v236 = vld [vmem:[#allocation5 + $0x170] sm:$0xf]
    %v237 = vld [vmem:[#allocation5 + $0x174] sm:$0xf]
    %v238 = vld [vmem:[#allocation5 + $0x178] sm:$0xf]
    %v239 = vld [vmem:[#allocation5 + $0x17c] sm:$0xf]
    %v240 = vld [vmem:[#allocation5 + $0x180] sm:$0xf]
    %v241 = vld [vmem:[#allocation5 + $0x184] sm:$0xf]
    %v242 = vld [vmem:[#allocation5 + $0x188] sm:$0xf]
    %v243 = vld [vmem:[#allocation5 + $0x18c] sm:$0xf]
    %v244 = vld [vmem:[#allocation5 + $0x190] sm:$0xf]
    %v245 = vld [vmem:[#allocation5 + $0x194] sm:$0xf]
    %v246 = vld [vmem:[#allocation5 + $0x198] sm:$0xf]
    %v247 = vld [vmem:[#allocation5 + $0x19c] sm:$0xf]
    %v248 = vld [vmem:[#allocation5 + $0x1a0] sm:$0xf]
    %v249 = vld [vmem:[#allocation5 + $0x1a4] sm:$0xf]
    %v250 = vld [vmem:[#allocation5 + $0x1a8] sm:$0xf]
    %v251 = vld [vmem:[#allocation5 + $0x1ac] sm:$0xf]
    %v252 = vld [vmem:[#allocation5 + $0x1b0] sm:$0xf]
    %v253 = vld [vmem:[#allocation5 + $0x1b4] sm:$0xf]
    %v254 = vld [vmem:[#allocation5 + $0x1b8] sm:$0xf]
    %v255 = vld [vmem:[#allocation5 + $0x1bc] sm:$0xf]
    %v256 = vld [vmem:[#allocation5 + $0x1c0] sm:$0xf]
    %v257 = vld [vmem:[#allocation5 + $0x1c4] sm:$0xf]
    %v258 = vld [vmem:[#allocation5 + $0x1c8] sm:$0xf]
    %v259 = vld [vmem:[#allocation5 + $0x1cc] sm:$0xf]
    %v260 = vld [vmem:[#allocation5 + $0x1d0] sm:$0xf]
    %v261 = vld [vmem:[#allocation5 + $0x1d4] sm:$0xf]
    %v262 = vld [vmem:[#allocation5 + $0x1d8] sm:$0xf]
    %v263 = vld [vmem:[#allocation5 + $0x1dc] sm:$0xf]
    %v264 = vld [vmem:[#allocation5 + $0x1e0] sm:$0xf]
    %v265 = vld [vmem:[#allocation5 + $0x1e4] sm:$0xf]
    %v266 = vld [vmem:[#allocation5 + $0x1e8] sm:$0xf]
    %v267 = vld [vmem:[#allocation5 + $0x1ec] sm:$0xf]
    %v268 = vld [vmem:[#allocation5 + $0x1f0] sm:$0xf]
    %v269 = vld [vmem:[#allocation5 + $0x1f4] sm:$0xf]
    %v270 = vld [vmem:[#allocation5 + $0x1f8] sm:$0xf]
    %v271 = vld [vmem:[#allocation5 + $0x1fc] sm:$0xf]
    %v272 = vlaneseq
    %v273 = vshrl.u32 %v272, 7
    %v274 = vsub.s32 0, %v273
    %v275 = vrot.slane %v89, %v274
    %v404 = vunpack.c.l.b16 %v144
    %v405 = vunpack.c.l.b16 %v145
    %v406 = vunpack.c.l.b16 %v146
    %v407 = vunpack.c.l.b16 %v147
    %v408 = vunpack.c.l.b16 %v148
    %v409 = vunpack.c.l.b16 %v149
    %v410 = vunpack.c.l.b16 %v150
    %v411 = vunpack.c.l.b16 %v151
    %v412 = vunpack.c.l.b16 %v152
    %v413 = vunpack.c.l.b16 %v153
    %v414 = vunpack.c.l.b16 %v154
    %v415 = vunpack.c.l.b16 %v155
    %v416 = vunpack.c.l.b16 %v156
    %v417 = vunpack.c.l.b16 %v157
    %v418 = vunpack.c.l.b16 %v158
    %v419 = vunpack.c.l.b16 %v159
    %v420 = vunpack.c.l.b16 %v160
    %v421 = vunpack.c.l.b16 %v161
    %v422 = vunpack.c.l.b16 %v162
    %v423 = vunpack.c.l.b16 %v163
    %v424 = vunpack.c.l.b16 %v164
    %v425 = vunpack.c.l.b16 %v165
    %v426 = vunpack.c.l.b16 %v166
    %v427 = vunpack.c.l.b16 %v167
    %v428 = vunpack.c.l.b16 %v168
    %v429 = vunpack.c.l.b16 %v169
    %v430 = vunpack.c.l.b16 %v170
    %v431 = vunpack.c.l.b16 %v171
    %v432 = vunpack.c.l.b16 %v172
    %v433 = vunpack.c.l.b16 %v173
    %v434 = vunpack.c.l.b16 %v174
    %v435 = vunpack.c.l.b16 %v175
    %v436 = vunpack.c.l.b16 %v176
    %v437 = vunpack.c.l.b16 %v177
    %v438 = vunpack.c.l.b16 %v178
    %v439 = vunpack.c.l.b16 %v179
    %v440 = vunpack.c.l.b16 %v180
    %v441 = vunpack.c.l.b16 %v181
    %v442 = vunpack.c.l.b16 %v182
    %v443 = vunpack.c.l.b16 %v183
    %v444 = vunpack.c.l.b16 %v184
    %v445 = vunpack.c.l.b16 %v185
    %v446 = vunpack.c.l.b16 %v186
    %v447 = vunpack.c.l.b16 %v187
    %v448 = vunpack.c.l.b16 %v188
    %v449 = vunpack.c.l.b16 %v189
    %v450 = vunpack.c.l.b16 %v190
    %v451 = vunpack.c.l.b16 %v191
    %v452 = vunpack.c.l.b16 %v192
    %v453 = vunpack.c.l.b16 %v193
    %v454 = vunpack.c.l.b16 %v194
    %v455 = vunpack.c.l.b16 %v195
    %v456 = vunpack.c.l.b16 %v196
    %v457 = vunpack.c.l.b16 %v197
    %v458 = vunpack.c.l.b16 %v198
    %v459 = vunpack.c.l.b16 %v199
    %v460 = vunpack.c.l.b16 %v200
    %v461 = vunpack.c.l.b16 %v201
    %v462 = vunpack.c.l.b16 %v202
    %v463 = vunpack.c.l.b16 %v203
    %v464 = vunpack.c.l.b16 %v204
    %v465 = vunpack.c.l.b16 %v205
    %v466 = vunpack.c.l.b16 %v206
    %v467 = vunpack.c.l.b16 %v207
    %v468 = vunpack.c.l.b16 %v208
    %v469 = vunpack.c.l.b16 %v209
    %v470 = vunpack.c.l.b16 %v210
    %v471 = vunpack.c.l.b16 %v211
    %v472 = vunpack.c.l.b16 %v212
    %v473 = vunpack.c.l.b16 %v213
    %v474 = vunpack.c.l.b16 %v214
    %v475 = vunpack.c.l.b16 %v215
    %v476 = vunpack.c.l.b16 %v216
    %v477 = vunpack.c.l.b16 %v217
    %v478 = vunpack.c.l.b16 %v218
    %v479 = vunpack.c.l.b16 %v219
    %v480 = vunpack.c.l.b16 %v220
    %v481 = vunpack.c.l.b16 %v221
    %v482 = vunpack.c.l.b16 %v222
    %v483 = vunpack.c.l.b16 %v223
    %v484 = vunpack.c.l.b16 %v224
    %v485 = vunpack.c.l.b16 %v225
    %v486 = vunpack.c.l.b16 %v226
    %v487 = vunpack.c.l.b16 %v227
    %v488 = vunpack.c.l.b16 %v228
    %v489 = vunpack.c.l.b16 %v229
    %v490 = vunpack.c.l.b16 %v230
    %v491 = vunpack.c.l.b16 %v231
    %v492 = vunpack.c.l.b16 %v232
    %v493 = vunpack.c.l.b16 %v233
    %v494 = vunpack.c.l.b16 %v234
    %v495 = vunpack.c.l.b16 %v235
    %v496 = vunpack.c.l.b16 %v236
    %v497 = vunpack.c.l.b16 %v237
    %v498 = vunpack.c.l.b16 %v238
    %v499 = vunpack.c.l.b16 %v239
    %v500 = vunpack.c.l.b16 %v240
    %v501 = vunpack.c.l.b16 %v241
    %v502 = vunpack.c.l.b16 %v242
    %v503 = vunpack.c.l.b16 %v243
    %v504 = vunpack.c.l.b16 %v244
    %v505 = vunpack.c.l.b16 %v245
    %v506 = vunpack.c.l.b16 %v246
    %v507 = vunpack.c.l.b16 %v247
    %v508 = vunpack.c.l.b16 %v248
    %v509 = vunpack.c.l.b16 %v249
    %v510 = vunpack.c.l.b16 %v250
    %v511 = vunpack.c.l.b16 %v251
    %v512 = vunpack.c.l.b16 %v252
    %v513 = vunpack.c.l.b16 %v253
    %v514 = vunpack.c.l.b16 %v254
    %v515 = vunpack.c.l.b16 %v255
    %v516 = vunpack.c.l.b16 %v256
    %v517 = vunpack.c.l.b16 %v257
    %v518 = vunpack.c.l.b16 %v258
    %v519 = vunpack.c.l.b16 %v259
    %v520 = vunpack.c.l.b16 %v260
    %v521 = vunpack.c.l.b16 %v261
    %v522 = vunpack.c.l.b16 %v262
    %v523 = vunpack.c.l.b16 %v263
    %v524 = vunpack.c.l.b16 %v264
    %v525 = vunpack.c.l.b16 %v265
    %v526 = vunpack.c.l.b16 %v266
    %v527 = vunpack.c.l.b16 %v267
    %v528 = vunpack.c.l.b16 %v268
    %v529 = vunpack.c.l.b16 %v269
    %v530 = vunpack.c.l.b16 %v270
    %v531 = vunpack.c.l.b16 %v271
    %v532 = vpack.c.b16 %v405, %v404
    %v533 = vpack.c.b16 %v407, %v406
    %v534 = vpack.c.b16 %v409, %v408
    %v535 = vpack.c.b16 %v411, %v410
    %v536 = vpack.c.b16 %v413, %v412
    %v537 = vpack.c.b16 %v415, %v414
    %v538 = vpack.c.b16 %v417, %v416
    %v539 = vpack.c.b16 %v419, %v418
    %v540 = vpack.c.b16 %v421, %v420
    %v541 = vpack.c.b16 %v423, %v422
    %v542 = vpack.c.b16 %v425, %v424
    %v543 = vpack.c.b16 %v427, %v426
    %v544 = vpack.c.b16 %v429, %v428
    %v545 = vpack.c.b16 %v431, %v430
    %v546 = vpack.c.b16 %v433, %v432
    %v547 = vpack.c.b16 %v435, %v434
    %v548 = vpack.c.b16 %v437, %v436
    %v549 = vpack.c.b16 %v439, %v438
    %v550 = vpack.c.b16 %v441, %v440
    %v551 = vpack.c.b16 %v443, %v442
    %v552 = vpack.c.b16 %v445, %v444
    %v553 = vpack.c.b16 %v447, %v446
    %v554 = vpack.c.b16 %v449, %v448
    %v555 = vpack.c.b16 %v451, %v450
    %v556 = vpack.c.b16 %v453, %v452
    %v557 = vpack.c.b16 %v455, %v454
    %v558 = vpack.c.b16 %v457, %v456
    %v559 = vpack.c.b16 %v459, %v458
    %v560 = vpack.c.b16 %v461, %v460
    %v561 = vpack.c.b16 %v463, %v462
    %v562 = vpack.c.b16 %v465, %v464
    %v563 = vpack.c.b16 %v467, %v466
    %v564 = vpack.c.b16 %v469, %v468
    %v565 = vpack.c.b16 %v471, %v470
    %v566 = vpack.c.b16 %v473, %v472
    %v567 = vpack.c.b16 %v475, %v474
    %v568 = vpack.c.b16 %v477, %v476
    %v569 = vpack.c.b16 %v479, %v478
    %v570 = vpack.c.b16 %v481, %v480
    %v571 = vpack.c.b16 %v483, %v482
    %v572 = vpack.c.b16 %v485, %v484
    %v573 = vpack.c.b16 %v487, %v486
    %v574 = vpack.c.b16 %v489, %v488
    %v575 = vpack.c.b16 %v491, %v490
    %v576 = vpack.c.b16 %v493, %v492
    %v577 = vpack.c.b16 %v495, %v494
    %v578 = vpack.c.b16 %v497, %v496
    %v579 = vpack.c.b16 %v499, %v498
    %v580 = vpack.c.b16 %v501, %v500
    %v581 = vpack.c.b16 %v503, %v502
    %v582 = vpack.c.b16 %v505, %v504
    %v583 = vpack.c.b16 %v507, %v506
    %v584 = vpack.c.b16 %v509, %v508
    %v585 = vpack.c.b16 %v511, %v510
    %v586 = vpack.c.b16 %v513, %v512
    %v587 = vpack.c.b16 %v515, %v514
    %v588 = vpack.c.b16 %v517, %v516
    %v589 = vpack.c.b16 %v519, %v518
    %v590 = vpack.c.b16 %v521, %v520
    %v591 = vpack.c.b16 %v523, %v522
    %v592 = vpack.c.b16 %v525, %v524
    %v593 = vpack.c.b16 %v527, %v526
    %v594 = vpack.c.b16 %v529, %v528
    %v595 = vpack.c.b16 %v531, %v530
    %660 = vmatprep.subr.bf16.mxu0 0
    %661 = vmatpush1.bf16.msra.mxu0 %v532
    %662 = vmatprep.subr.bf16.mxu0 0
    %663 = vmatpush1.bf16.msra.mxu0 %v533
    %664 = vmatprep.subr.bf16.mxu0 0
    %665 = vmatpush1.bf16.msra.mxu0 %v534
    %666 = vmatprep.subr.bf16.mxu0 0
    %667 = vmatpush1.bf16.msra.mxu0 %v535
    %668 = vmatprep.subr.bf16.mxu0 0
    %669 = vmatpush1.bf16.msra.mxu0 %v536
    %670 = vmatprep.subr.bf16.mxu0 0
    %671 = vmatpush1.bf16.msra.mxu0 %v537
    %672 = vmatprep.subr.bf16.mxu0 0
    %673 = vmatpush1.bf16.msra.mxu0 %v538
    %674 = vmatprep.subr.bf16.mxu0 0
    %675 = vmatpush1.bf16.msra.mxu0 %v539
    %676 = vmatprep.subr.bf16.mxu0 0
    %677 = vmatpush1.bf16.msra.mxu0 %v540
    %678 = vmatprep.subr.bf16.mxu0 0
    %679 = vmatpush1.bf16.msra.mxu0 %v541
    %680 = vmatprep.subr.bf16.mxu0 0
    %681 = vmatpush1.bf16.msra.mxu0 %v542
    %682 = vmatprep.subr.bf16.mxu0 0
    %683 = vmatpush1.bf16.msra.mxu0 %v543
    %684 = vmatprep.subr.bf16.mxu0 0
    %685 = vmatpush1.bf16.msra.mxu0 %v544
    %686 = vmatprep.subr.bf16.mxu0 0
    %687 = vmatpush1.bf16.msra.mxu0 %v545
    %688 = vmatprep.subr.bf16.mxu0 0
    %689 = vmatpush1.bf16.msra.mxu0 %v546
    %690 = vmatprep.subr.bf16.mxu0 0
    %691 = vmatpush1.bf16.msra.mxu0 %v547
    %692 = vmatprep.mubr.bf16.mxu0 %v137
    %693 = vmatmul.mubr.bf16.gmra.mrb[0].mxu0 %v136
    %v694 = vpop.f32.mrb[0].mxu0
    %v695 = vadd.f32 %v275, %v694
    %v696 = vpop.f32.mrb[0].mxu0
    %v697 = vpop.f32.mrb[0].mxu0
    %v698 = vpop.f32.mrb[0].mxu0
    %699 = vdwg.mxu0
    %700 = vmatprep.subr.bf16.mxu0 0
    %701 = vmatpush1.bf16.msra.mxu0 %v548
    %702 = vmatprep.subr.bf16.mxu0 0
    %703 = vmatpush1.bf16.msra.mxu0 %v549
    %704 = vmatprep.subr.bf16.mxu0 0
    %705 = vmatpush1.bf16.msra.mxu0 %v550
    %706 = vmatprep.subr.bf16.mxu0 0
    %707 = vmatpush1.bf16.msra.mxu0 %v551
    %708 = vmatprep.subr.bf16.mxu0 0
    %709 = vmatpush1.bf16.msra.mxu0 %v552
    %710 = vmatprep.subr.bf16.mxu0 0
    %711 = vmatpush1.bf16.msra.mxu0 %v553
    %712 = vmatprep.subr.bf16.mxu0 0
    %713 = vmatpush1.bf16.msra.mxu0 %v554
    %714 = vmatprep.subr.bf16.mxu0 0
    %715 = vmatpush1.bf16.msra.mxu0 %v555
    %716 = vmatprep.subr.bf16.mxu0 0
    %717 = vmatpush1.bf16.msra.mxu0 %v556
    %718 = vmatprep.subr.bf16.mxu0 0
    %719 = vmatpush1.bf16.msra.mxu0 %v557
    %720 = vmatprep.subr.bf16.mxu0 0
    %721 = vmatpush1.bf16.msra.mxu0 %v558
    %722 = vmatprep.subr.bf16.mxu0 0
    %723 = vmatpush1.bf16.msra.mxu0 %v559
    %724 = vmatprep.subr.bf16.mxu0 0
    %725 = vmatpush1.bf16.msra.mxu0 %v560
    %726 = vmatprep.subr.bf16.mxu0 0
    %727 = vmatpush1.bf16.msra.mxu0 %v561
    %728 = vmatprep.subr.bf16.mxu0 0
    %729 = vmatpush1.bf16.msra.mxu0 %v562
    %730 = vmatprep.subr.bf16.mxu0 0
    %731 = vmatpush1.bf16.msra.mxu0 %v563
    %732 = vmatprep.mubr.bf16.mxu0 %v139
    %733 = vmatmul.mubr.bf16.gmra.mrb[0].mxu0 %v138
    %v734 = vpop.f32.mrb[0].mxu0
    %v735 = vadd.f32 %v695, %v734
    %v736 = vpop.f32.mrb[0].mxu0
    %v737 = vpop.f32.mrb[0].mxu0
    %v738 = vpop.f32.mrb[0].mxu0
    %739 = vdwg.mxu0
    %740 = vmatprep.subr.bf16.mxu0 0
    %741 = vmatpush1.bf16.msra.mxu0 %v564
    %742 = vmatprep.subr.bf16.mxu0 0
    %743 = vmatpush1.bf16.msra.mxu0 %v565
    %744 = vmatprep.subr.bf16.mxu0 0
    %745 = vmatpush1.bf16.msra.mxu0 %v566
    %746 = vmatprep.subr.bf16.mxu0 0
    %747 = vmatpush1.bf16.msra.mxu0 %v567
    %748 = vmatprep.subr.bf16.mxu0 0
    %749 = vmatpush1.bf16.msra.mxu0 %v568
    %750 = vmatprep.subr.bf16.mxu0 0
    %751 = vmatpush1.bf16.msra.mxu0 %v569
    %752 = vmatprep.subr.bf16.mxu0 0
    %753 = vmatpush1.bf16.msra.mxu0 %v570
    %754 = vmatprep.subr.bf16.mxu0 0
    %755 = vmatpush1.bf16.msra.mxu0 %v571
    %756 = vmatprep.subr.bf16.mxu0 0
    %757 = vmatpush1.bf16.msra.mxu0 %v572
    %758 = vmatprep.subr.bf16.mxu0 0
    %759 = vmatpush1.bf16.msra.mxu0 %v573
    %760 = vmatprep.subr.bf16.mxu0 0
    %761 = vmatpush1.bf16.msra.mxu0 %v574
    %762 = vmatprep.subr.bf16.mxu0 0
    %763 = vmatpush1.bf16.msra.mxu0 %v575
    %764 = vmatprep.subr.bf16.mxu0 0
    %765 = vmatpush1.bf16.msra.mxu0 %v576
    %766 = vmatprep.subr.bf16.mxu0 0
    %767 = vmatpush1.bf16.msra.mxu0 %v577
    %768 = vmatprep.subr.bf16.mxu0 0
    %769 = vmatpush1.bf16.msra.mxu0 %v578
    %770 = vmatprep.subr.bf16.mxu0 0
    %771 = vmatpush1.bf16.msra.mxu0 %v579
    %772 = vmatprep.mubr.bf16.mxu0 %v141
    %773 = vmatmul.mubr.bf16.gmra.mrb[0].mxu0 %v140
    %v774 = vpop.f32.mrb[0].mxu0
    %v775 = vadd.f32 %v735, %v774
    %v776 = vpop.f32.mrb[0].mxu0
    %v777 = vpop.f32.mrb[0].mxu0
    %v778 = vpop.f32.mrb[0].mxu0
    %779 = vdwg.mxu0
    %780 = vmatprep.subr.bf16.mxu0 0
    %781 = vmatpush1.bf16.msra.mxu0 %v580
    %782 = vmatprep.subr.bf16.mxu0 0
    %783 = vmatpush1.bf16.msra.mxu0 %v581
    %784 = vmatprep.subr.bf16.mxu0 0
    %785 = vmatpush1.bf16.msra.mxu0 %v582
    %786 = vmatprep.subr.bf16.mxu0 0
    %787 = vmatpush1.bf16.msra.mxu0 %v583
    %788 = vmatprep.subr.bf16.mxu0 0
    %789 = vmatpush1.bf16.msra.mxu0 %v584
    %790 = vmatprep.subr.bf16.mxu0 0
    %791 = vmatpush1.bf16.msra.mxu0 %v585
    %792 = vmatprep.subr.bf16.mxu0 0
    %793 = vmatpush1.bf16.msra.mxu0 %v586
    %794 = vmatprep.subr.bf16.mxu0 0
    %795 = vmatpush1.bf16.msra.mxu0 %v587
    %796 = vmatprep.subr.bf16.mxu0 0
    %797 = vmatpush1.bf16.msra.mxu0 %v588
    %798 = vmatprep.subr.bf16.mxu0 0
    %799 = vmatpush1.bf16.msra.mxu0 %v589
    %800 = vmatprep.subr.bf16.mxu0 0
    %801 = vmatpush1.bf16.msra.mxu0 %v590
    %802 = vmatprep.subr.bf16.mxu0 0
    %803 = vmatpush1.bf16.msra.mxu0 %v591
    %804 = vmatprep.subr.bf16.mxu0 0
    %805 = vmatpush1.bf16.msra.mxu0 %v592
    %806 = vmatprep.subr.bf16.mxu0 0
    %807 = vmatpush1.bf16.msra.mxu0 %v593
    %808 = vmatprep.subr.bf16.mxu0 0
    %809 = vmatpush1.bf16.msra.mxu0 %v594
    %810 = vmatprep.subr.bf16.mxu0 0
    %811 = vmatpush1.bf16.msra.mxu0 %v595
    %812 = vmatprep.mubr.bf16.mxu0 %v143
    %813 = vmatmul.mubr.bf16.gmra.mrb[0].mxu0 %v142
    %v814 = vpop.f32.mrb[0].mxu0
    %v815 = vadd.f32 %v775, %v814
    %v816 = vpop.f32.mrb[0].mxu0
    %v817 = vpop.f32.mrb[0].mxu0
    %v818 = vpop.f32.mrb[0].mxu0
    %819 = vdwg.mxu0
    %v820 = vmax.f32 %v815, 0.0
    %v821 = vpack.c.bf16 %v820, %v820
    %v822 = vld [vmem:[#allocation7] sm:$0xf]
    %v823 = vld [vmem:[#allocation7 + $0x4] sm:$0xf]
    %v824 = vld [vmem:[#allocation7 + $0x8] sm:$0xf]
    %v825 = vld [vmem:[#allocation7 + $0xc] sm:$0xf]
    %v826 = vld [vmem:[#allocation7 + $0x10] sm:$0xf]
    %v827 = vld [vmem:[#allocation7 + $0x14] sm:$0xf]
    %v828 = vld [vmem:[#allocation7 + $0x18] sm:$0xf]
    %v829 = vld [vmem:[#allocation7 + $0x1c] sm:$0xf]
    %v830 = vld [vmem:[#allocation7 + $0x20] sm:$0xf]
    %v831 = vld [vmem:[#allocation7 + $0x24] sm:$0xf]
    %v832 = vld [vmem:[#allocation7 + $0x28] sm:$0xf]
    %v833 = vld [vmem:[#allocation7 + $0x2c] sm:$0xf]
    %v834 = vld [vmem:[#allocation7 + $0x30] sm:$0xf]
    %v835 = vld [vmem:[#allocation7 + $0x34] sm:$0xf]
    %v836 = vld [vmem:[#allocation7 + $0x38] sm:$0xf]
    %v837 = vld [vmem:[#allocation7 + $0x3c] sm:$0xf]
    %v838 = vlaneseq
    %v839 = vshrl.u32 %v838, 7
    %v840 = vsub.s32 1, %v839
    %v841 = vrot.slane %v89, %v840
    %v858 = vunpack.c.l.b16 %v822
    %v859 = vunpack.c.l.b16 %v823
    %v860 = vunpack.c.l.b16 %v824
    %v861 = vunpack.c.l.b16 %v825
    %v862 = vunpack.c.l.b16 %v826
    %v863 = vunpack.c.l.b16 %v827
    %v864 = vunpack.c.l.b16 %v828
    %v865 = vunpack.c.l.b16 %v829
    %v866 = vunpack.c.l.b16 %v830
    %v867 = vunpack.c.l.b16 %v831
    %v868 = vunpack.c.l.b16 %v832
    %v869 = vunpack.c.l.b16 %v833
    %v870 = vunpack.c.l.b16 %v834
    %v871 = vunpack.c.l.b16 %v835
    %v872 = vunpack.c.l.b16 %v836
    %v873 = vunpack.c.l.b16 %v837
    %v874 = vpack.c.b16 %v859, %v858
    %v875 = vpack.c.b16 %v861, %v860
    %v876 = vpack.c.b16 %v863, %v862
    %v877 = vpack.c.b16 %v865, %v864
    %v878 = vpack.c.b16 %v867, %v866
    %v879 = vpack.c.b16 %v869, %v868
    %v880 = vpack.c.b16 %v871, %v870
    %v881 = vpack.c.b16 %v873, %v872
    %890 = vmatprep.subr.bf16.mxu0 0
    %891 = vmatpush1.bf16.msra.mxu0 %v874
    %892 = vmatprep.subr.bf16.mxu0 0
    %893 = vmatpush1.bf16.msra.mxu0 %v875
    %894 = vmatprep.subr.bf16.mxu0 0
    %895 = vmatpush1.bf16.msra.mxu0 %v876
    %896 = vmatprep.subr.bf16.mxu0 0
    %897 = vmatpush1.bf16.msra.mxu0 %v877
    %898 = vmatprep.subr.bf16.mxu0 0
    %899 = vmatpush1.bf16.msra.mxu0 %v878
    %900 = vmatprep.subr.bf16.mxu0 0
    %901 = vmatpush1.bf16.msra.mxu0 %v879
    %902 = vmatprep.subr.bf16.mxu0 0
    %903 = vmatpush1.bf16.msra.mxu0 %v880
    %904 = vmatprep.subr.bf16.mxu0 0
    %905 = vmatpush1.bf16.msra.mxu0 %v881
    %906 = vmatprep.subr.bf16.mxu0 0
    %907 = vmatpush1.bf16.msra.mxu0 0
    %908 = vmatprep.subr.bf16.mxu0 0
    %909 = vmatpush1.bf16.msra.mxu0 0
    %910 = vmatprep.subr.bf16.mxu0 0
    %911 = vmatpush1.bf16.msra.mxu0 0
    %912 = vmatprep.subr.bf16.mxu0 0
    %913 = vmatpush1.bf16.msra.mxu0 0
    %914 = vmatprep.subr.bf16.mxu0 0
    %915 = vmatpush1.bf16.msra.mxu0 0
    %916 = vmatprep.subr.bf16.mxu0 0
    %917 = vmatpush1.bf16.msra.mxu0 0
    %918 = vmatprep.subr.bf16.mxu0 0
    %919 = vmatpush1.bf16.msra.mxu0 0
    %920 = vmatprep.subr.bf16.mxu0 0
    %921 = vmatpush1.bf16.msra.mxu0 0
    %922 = vmatprep.mubr.bf16.mxu0 0
    %923 = vmatmul.mubr.bf16.gmra.mrb[0].mxu0 %v821
    %v924 = vpop.f32.mrb[0].mxu0
    %v925 = vadd.f32 %v841, %v924
    %v926 = vpop.f32.mrb[0].mxu0
    %v927 = vpop.f32.mrb[0].mxu0
    %v928 = vpop.f32.mrb[0].mxu0
    %929 = vdwg.mxu0
    %v930 = vmax.f32 %v925, 0.0
    %v931 = vpack.c.bf16 %v930, %v930
    %s932 = scalar_lea.vmem [#allocation7], 64
    %v933 = vld [vmem:[%s932] sm:$0xf]
    %v934 = vld [vmem:[%s932 + $0x4] sm:$0xf]
    %v935 = vld [vmem:[%s932 + $0x8] sm:$0xf]
    %v936 = vld [vmem:[%s932 + $0xc] sm:$0xf]
    %v937 = vld [vmem:[%s932 + $0x10] sm:$0xf]
    %v938 = vld [vmem:[%s932 + $0x14] sm:$0xf]
    %v939 = vld [vmem:[%s932 + $0x18] sm:$0xf]
    %v940 = vld [vmem:[%s932 + $0x1c] sm:$0xf]
    %v941 = vld [vmem:[%s932 + $0x20] sm:$0xf]
    %v942 = vld [vmem:[%s932 + $0x24] sm:$0xf]
    %v943 = vld [vmem:[%s932 + $0x28] sm:$0xf]
    %v944 = vld [vmem:[%s932 + $0x2c] sm:$0xf]
    %v945 = vld [vmem:[%s932 + $0x30] sm:$0xf]
    %v946 = vld [vmem:[%s932 + $0x34] sm:$0xf]
    %v947 = vld [vmem:[%s932 + $0x38] sm:$0xf]
    %v948 = vld [vmem:[%s932 + $0x3c] sm:$0xf]
    %v949 = vlaneseq
    %v950 = vshrl.u32 %v949, 7
    %v951 = vsub.s32 2, %v950
    %v952 = vrot.slane %v89, %v951
    %v969 = vunpack.c.l.b16 %v933
    %v970 = vunpack.c.l.b16 %v934
    %v971 = vunpack.c.l.b16 %v935
    %v972 = vunpack.c.l.b16 %v936
    %v973 = vunpack.c.l.b16 %v937
    %v974 = vunpack.c.l.b16 %v938
    %v975 = vunpack.c.l.b16 %v939
    %v976 = vunpack.c.l.b16 %v940
    %v977 = vunpack.c.l.b16 %v941
    %v978 = vunpack.c.l.b16 %v942
    %v979 = vunpack.c.l.b16 %v943
    %v980 = vunpack.c.l.b16 %v944
    %v981 = vunpack.c.l.b16 %v945
    %v982 = vunpack.c.l.b16 %v946
    %v983 = vunpack.c.l.b16 %v947
    %v984 = vunpack.c.l.b16 %v948
    %v985 = vpack.c.b16 %v970, %v969
    %v986 = vpack.c.b16 %v972, %v971
    %v987 = vpack.c.b16 %v974, %v973
    %v988 = vpack.c.b16 %v976, %v975
    %v989 = vpack.c.b16 %v978, %v977
    %v990 = vpack.c.b16 %v980, %v979
    %v991 = vpack.c.b16 %v982, %v981
    %v992 = vpack.c.b16 %v984, %v983
    %1001 = vmatprep.subr.bf16.mxu0 0
    %1002 = vmatpush1.bf16.msra.mxu0 %v985
    %1003 = vmatprep.subr.bf16.mxu0 0
    %1004 = vmatpush1.bf16.msra.mxu0 %v986
    %1005 = vmatprep.subr.bf16.mxu0 0
    %1006 = vmatpush1.bf16.msra.mxu0 %v987
    %1007 = vmatprep.subr.bf16.mxu0 0
    %1008 = vmatpush1.bf16.msra.mxu0 %v988
    %1009 = vmatprep.subr.bf16.mxu0 0
    %1010 = vmatpush1.bf16.msra.mxu0 %v989
    %1011 = vmatprep.subr.bf16.mxu0 0
    %1012 = vmatpush1.bf16.msra.mxu0 %v990
    %1013 = vmatprep.subr.bf16.mxu0 0
    %1014 = vmatpush1.bf16.msra.mxu0 %v991
    %1015 = vmatprep.subr.bf16.mxu0 0
    %1016 = vmatpush1.bf16.msra.mxu0 %v992
    %1017 = vmatprep.subr.bf16.mxu0 0
    %1018 = vmatpush1.bf16.msra.mxu0 0
    %1019 = vmatprep.subr.bf16.mxu0 0
    %1020 = vmatpush1.bf16.msra.mxu0 0
    %1021 = vmatprep.subr.bf16.mxu0 0
    %1022 = vmatpush1.bf16.msra.mxu0 0
    %1023 = vmatprep.subr.bf16.mxu0 0
    %1024 = vmatpush1.bf16.msra.mxu0 0
    %1025 = vmatprep.subr.bf16.mxu0 0
    %1026 = vmatpush1.bf16.msra.mxu0 0
    %1027 = vmatprep.subr.bf16.mxu0 0
    %1028 = vmatpush1.bf16.msra.mxu0 0
    %1029 = vmatprep.subr.bf16.mxu0 0
    %1030 = vmatpush1.bf16.msra.mxu0 0
    %1031 = vmatprep.subr.bf16.mxu0 0
    %1032 = vmatpush1.bf16.msra.mxu0 0
    %1033 = vmatprep.mubr.bf16.mxu0 0
    %1034 = vmatmul.mubr.bf16.gmra.mrb[0].mxu0 %v931
    %v1035 = vpop.f32.mrb[0].mxu0
    %v1036 = vadd.f32 %v952, %v1035
    %v1037 = vpop.f32.mrb[0].mxu0
    %v1038 = vpop.f32.mrb[0].mxu0
    %v1039 = vpop.f32.mrb[0].mxu0
    %1040 = vdwg.mxu0
    %v1041 = vmax.f32 %v1036, 0.0
    %v1042 = vpack.c.bf16 %v1041, %v1041
    %s1043 = scalar_lea.vmem [#allocation7], 128
    %v1044 = vld [vmem:[%s1043] sm:$0xf]
    %v1045 = vld [vmem:[%s1043 + $0x4] sm:$0xf]
    %v1046 = vld [vmem:[%s1043 + $0x8] sm:$0xf]
    %v1047 = vld [vmem:[%s1043 + $0xc] sm:$0xf]
    %v1048 = vld [vmem:[%s1043 + $0x10] sm:$0xf]
    %v1049 = vld [vmem:[%s1043 + $0x14] sm:$0xf]
    %v1050 = vld [vmem:[%s1043 + $0x18] sm:$0xf]
    %v1051 = vld [vmem:[%s1043 + $0x1c] sm:$0xf]
    %v1052 = vld [vmem:[%s1043 + $0x20] sm:$0xf]
    %v1053 = vld [vmem:[%s1043 + $0x24] sm:$0xf]
    %v1054 = vld [vmem:[%s1043 + $0x28] sm:$0xf]
    %v1055 = vld [vmem:[%s1043 + $0x2c] sm:$0xf]
    %v1056 = vld [vmem:[%s1043 + $0x30] sm:$0xf]
    %v1057 = vld [vmem:[%s1043 + $0x34] sm:$0xf]
    %v1058 = vld [vmem:[%s1043 + $0x38] sm:$0xf]
    %v1059 = vld [vmem:[%s1043 + $0x3c] sm:$0xf]
    %v1060 = vlaneseq
    %v1061 = vshrl.u32 %v1060, 7
    %v1062 = vsub.s32 3, %v1061
    %v1063 = vrot.slane %v89, %v1062
    %v1080 = vunpack.c.l.b16 %v1044
    %v1081 = vunpack.c.l.b16 %v1045
    %v1082 = vunpack.c.l.b16 %v1046
    %v1083 = vunpack.c.l.b16 %v1047
    %v1084 = vunpack.c.l.b16 %v1048
    %v1085 = vunpack.c.l.b16 %v1049
    %v1086 = vunpack.c.l.b16 %v1050
    %v1087 = vunpack.c.l.b16 %v1051
    %v1088 = vunpack.c.l.b16 %v1052
    %v1089 = vunpack.c.l.b16 %v1053
    %v1090 = vunpack.c.l.b16 %v1054
    %v1091 = vunpack.c.l.b16 %v1055
    %v1092 = vunpack.c.l.b16 %v1056
    %v1093 = vunpack.c.l.b16 %v1057
    %v1094 = vunpack.c.l.b16 %v1058
    %v1095 = vunpack.c.l.b16 %v1059
    %v1096 = vpack.c.b16 %v1081, %v1080
    %v1097 = vpack.c.b16 %v1083, %v1082
    %v1098 = vpack.c.b16 %v1085, %v1084
    %v1099 = vpack.c.b16 %v1087, %v1086
    %v1100 = vpack.c.b16 %v1089, %v1088
    %v1101 = vpack.c.b16 %v1091, %v1090
    %v1102 = vpack.c.b16 %v1093, %v1092
    %v1103 = vpack.c.b16 %v1095, %v1094
    %1112 = vmatprep.subr.bf16.mxu0 0
    %1113 = vmatpush1.bf16.msra.mxu0 %v1096
    %1114 = vmatprep.subr.bf16.mxu0 0
    %1115 = vmatpush1.bf16.msra.mxu0 %v1097
    %1116 = vmatprep.subr.bf16.mxu0 0
    %1117 = vmatpush1.bf16.msra.mxu0 %v1098
    %1118 = vmatprep.subr.bf16.mxu0 0
    %1119 = vmatpush1.bf16.msra.mxu0 %v1099
    %1120 = vmatprep.subr.bf16.mxu0 0
    %1121 = vmatpush1.bf16.msra.mxu0 %v1100
    %1122 = vmatprep.subr.bf16.mxu0 0
    %1123 = vmatpush1.bf16.msra.mxu0 %v1101
    %1124 = vmatprep.subr.bf16.mxu0 0
    %1125 = vmatpush1.bf16.msra.mxu0 %v1102
    %1126 = vmatprep.subr.bf16.mxu0 0
    %1127 = vmatpush1.bf16.msra.mxu0 %v1103
    %1128 = vmatprep.subr.bf16.mxu0 0
    %1129 = vmatpush1.bf16.msra.mxu0 0
    %1130 = vmatprep.subr.bf16.mxu0 0
    %1131 = vmatpush1.bf16.msra.mxu0 0
    %1132 = vmatprep.subr.bf16.mxu0 0
    %1133 = vmatpush1.bf16.msra.mxu0 0
    %1134 = vmatprep.subr.bf16.mxu0 0
    %1135 = vmatpush1.bf16.msra.mxu0 0
    %1136 = vmatprep.subr.bf16.mxu0 0
    %1137 = vmatpush1.bf16.msra.mxu0 0
    %1138 = vmatprep.subr.bf16.mxu0 0
    %1139 = vmatpush1.bf16.msra.mxu0 0
    %1140 = vmatprep.subr.bf16.mxu0 0
    %1141 = vmatpush1.bf16.msra.mxu0 0
    %1142 = vmatprep.subr.bf16.mxu0 0
    %1143 = vmatpush1.bf16.msra.mxu0 0
    %1144 = vmatprep.mubr.bf16.mxu0 0
    %1145 = vmatmul.mubr.bf16.gmra.mrb[0].mxu0 %v1042
    %v1146 = vpop.f32.mrb[0].mxu0
    %v1147 = vadd.f32 %v1063, %v1146
    %v1148 = vpop.f32.mrb[0].mxu0
    %v1149 = vpop.f32.mrb[0].mxu0
    %v1150 = vpop.f32.mrb[0].mxu0
    %1151 = vdwg.mxu0
    %v1152 = vmax.f32 %v1147, 0.0
    %v1153 = vpack.c.bf16 %v1152, %v1152
    %s1154 = scalar_lea.vmem [#allocation7], 192
    %v1155 = vld [vmem:[%s1154] sm:$0xf]
    %v1156 = vld [vmem:[%s1154 + $0x4] sm:$0xf]
    %v1157 = vld [vmem:[%s1154 + $0x8] sm:$0xf]
    %v1158 = vld [vmem:[%s1154 + $0xc] sm:$0xf]
    %v1159 = vld [vmem:[%s1154 + $0x10] sm:$0xf]
    %v1160 = vld [vmem:[%s1154 + $0x14] sm:$0xf]
    %v1161 = vld [vmem:[%s1154 + $0x18] sm:$0xf]
    %v1162 = vld [vmem:[%s1154 + $0x1c] sm:$0xf]
    %v1163 = vld [vmem:[%s1154 + $0x20] sm:$0xf]
    %v1164 = vld [vmem:[%s1154 + $0x24] sm:$0xf]
    %v1165 = vld [vmem:[%s1154 + $0x28] sm:$0xf]
    %v1166 = vld [vmem:[%s1154 + $0x2c] sm:$0xf]
    %v1167 = vld [vmem:[%s1154 + $0x30] sm:$0xf]
    %v1168 = vld [vmem:[%s1154 + $0x34] sm:$0xf]
    %v1169 = vld [vmem:[%s1154 + $0x38] sm:$0xf]
    %v1170 = vld [vmem:[%s1154 + $0x3c] sm:$0xf]
    %v1171 = vlaneseq
    %v1172 = vshrl.u32 %v1171, 7
    %v1173 = vsub.s32 4, %v1172
    %v1174 = vrot.slane %v89, %v1173
    %v1191 = vunpack.c.l.b16 %v1155
    %v1192 = vunpack.c.l.b16 %v1156
    %v1193 = vunpack.c.l.b16 %v1157
    %v1194 = vunpack.c.l.b16 %v1158
    %v1195 = vunpack.c.l.b16 %v1159
    %v1196 = vunpack.c.l.b16 %v1160
    %v1197 = vunpack.c.l.b16 %v1161
    %v1198 = vunpack.c.l.b16 %v1162
    %v1199 = vunpack.c.l.b16 %v1163
    %v1200 = vunpack.c.l.b16 %v1164
    %v1201 = vunpack.c.l.b16 %v1165
    %v1202 = vunpack.c.l.b16 %v1166
    %v1203 = vunpack.c.l.b16 %v1167
    %v1204 = vunpack.c.l.b16 %v1168
    %v1205 = vunpack.c.l.b16 %v1169
    %v1206 = vunpack.c.l.b16 %v1170
    %v1207 = vpack.c.b16 %v1192, %v1191
    %v1208 = vpack.c.b16 %v1194, %v1193
    %v1209 = vpack.c.b16 %v1196, %v1195
    %v1210 = vpack.c.b16 %v1198, %v1197
    %v1211 = vpack.c.b16 %v1200, %v1199
    %v1212 = vpack.c.b16 %v1202, %v1201
    %v1213 = vpack.c.b16 %v1204, %v1203
    %v1214 = vpack.c.b16 %v1206, %v1205
    %1223 = vmatprep.subr.bf16.mxu0 0
    %1224 = vmatpush1.bf16.msra.mxu0 %v1207
    %1225 = vmatprep.subr.bf16.mxu0 0
    %1226 = vmatpush1.bf16.msra.mxu0 %v1208
    %1227 = vmatprep.subr.bf16.mxu0 0
    %1228 = vmatpush1.bf16.msra.mxu0 %v1209
    %1229 = vmatprep.subr.bf16.mxu0 0
    %1230 = vmatpush1.bf16.msra.mxu0 %v1210
    %1231 = vmatprep.subr.bf16.mxu0 0
    %1232 = vmatpush1.bf16.msra.mxu0 %v1211
    %1233 = vmatprep.subr.bf16.mxu0 0
    %1234 = vmatpush1.bf16.msra.mxu0 %v1212
    %1235 = vmatprep.subr.bf16.mxu0 0
    %1236 = vmatpush1.bf16.msra.mxu0 %v1213
    %1237 = vmatprep.subr.bf16.mxu0 0
    %1238 = vmatpush1.bf16.msra.mxu0 %v1214
    %1239 = vmatprep.subr.bf16.mxu0 0
    %1240 = vmatpush1.bf16.msra.mxu0 0
    %1241 = vmatprep.subr.bf16.mxu0 0
    %1242 = vmatpush1.bf16.msra.mxu0 0
    %1243 = vmatprep.subr.bf16.mxu0 0
    %1244 = vmatpush1.bf16.msra.mxu0 0
    %1245 = vmatprep.subr.bf16.mxu0 0
    %1246 = vmatpush1.bf16.msra.mxu0 0
    %1247 = vmatprep.subr.bf16.mxu0 0
    %1248 = vmatpush1.bf16.msra.mxu0 0
    %1249 = vmatprep.subr.bf16.mxu0 0
    %1250 = vmatpush1.bf16.msra.mxu0 0
    %1251 = vmatprep.subr.bf16.mxu0 0
    %1252 = vmatpush1.bf16.msra.mxu0 0
    %1253 = vmatprep.subr.bf16.mxu0 0
    %1254 = vmatpush1.bf16.msra.mxu0 0
    %1255 = vmatprep.mubr.bf16.mxu0 0
    %1256 = vmatmul.mubr.bf16.gmra.mrb[0].mxu0 %v1153
    %v1257 = vpop.f32.mrb[0].mxu0
    %v1258 = vadd.f32 %v1174, %v1257
    %v1259 = vpop.f32.mrb[0].mxu0
    %v1260 = vpop.f32.mrb[0].mxu0
    %v1261 = vpop.f32.mrb[0].mxu0
    %1262 = vdwg.mxu0
    %v1263 = vmax.f32 %v1258, 0.0
    %v1264 = vpack.c.bf16 %v1263, %v1263
    %s1265 = scalar_lea.vmem [#allocation7], 256
    %v1266 = vld [vmem:[%s1265] sm:$0xf]
    %v1267 = vld [vmem:[%s1265 + $0x4] sm:$0xf]
    %v1268 = vld [vmem:[%s1265 + $0x8] sm:$0xf]
    %v1269 = vld [vmem:[%s1265 + $0xc] sm:$0xf]
    %v1270 = vld [vmem:[%s1265 + $0x10] sm:$0xf]
    %v1271 = vld [vmem:[%s1265 + $0x14] sm:$0xf]
    %v1272 = vld [vmem:[%s1265 + $0x18] sm:$0xf]
    %v1273 = vld [vmem:[%s1265 + $0x1c] sm:$0xf]
    %v1274 = vld [vmem:[%s1265 + $0x20] sm:$0xf]
    %v1275 = vld [vmem:[%s1265 + $0x24] sm:$0xf]
    %v1276 = vld [vmem:[%s1265 + $0x28] sm:$0xf]
    %v1277 = vld [vmem:[%s1265 + $0x2c] sm:$0xf]
    %v1278 = vld [vmem:[%s1265 + $0x30] sm:$0xf]
    %v1279 = vld [vmem:[%s1265 + $0x34] sm:$0xf]
    %v1280 = vld [vmem:[%s1265 + $0x38] sm:$0xf]
    %v1281 = vld [vmem:[%s1265 + $0x3c] sm:$0xf]
    %v1282 = vlaneseq
    %v1283 = vshrl.u32 %v1282, 7
    %v1284 = vsub.s32 5, %v1283
    %v1285 = vrot.slane %v89, %v1284
    %v1302 = vunpack.c.l.b16 %v1266
    %v1303 = vunpack.c.l.b16 %v1267
    %v1304 = vunpack.c.l.b16 %v1268
    %v1305 = vunpack.c.l.b16 %v1269
    %v1306 = vunpack.c.l.b16 %v1270
    %v1307 = vunpack.c.l.b16 %v1271
    %v1308 = vunpack.c.l.b16 %v1272
    %v1309 = vunpack.c.l.b16 %v1273
    %v1310 = vunpack.c.l.b16 %v1274
    %v1311 = vunpack.c.l.b16 %v1275
    %v1312 = vunpack.c.l.b16 %v1276
    %v1313 = vunpack.c.l.b16 %v1277
    %v1314 = vunpack.c.l.b16 %v1278
    %v1315 = vunpack.c.l.b16 %v1279
    %v1316 = vunpack.c.l.b16 %v1280
    %v1317 = vunpack.c.l.b16 %v1281
    %v1318 = vpack.c.b16 %v1303, %v1302
    %v1319 = vpack.c.b16 %v1305, %v1304
    %v1320 = vpack.c.b16 %v1307, %v1306
    %v1321 = vpack.c.b16 %v1309, %v1308
    %v1322 = vpack.c.b16 %v1311, %v1310
    %v1323 = vpack.c.b16 %v1313, %v1312
    %v1324 = vpack.c.b16 %v1315, %v1314
    %v1325 = vpack.c.b16 %v1317, %v1316
    %1334 = vmatprep.subr.bf16.mxu0 0
    %1335 = vmatpush1.bf16.msra.mxu0 %v1318
    %1336 = vmatprep.subr.bf16.mxu0 0
    %1337 = vmatpush1.bf16.msra.mxu0 %v1319
    %1338 = vmatprep.subr.bf16.mxu0 0
    %1339 = vmatpush1.bf16.msra.mxu0 %v1320
    %1340 = vmatprep.subr.bf16.mxu0 0
    %1341 = vmatpush1.bf16.msra.mxu0 %v1321
    %1342 = vmatprep.subr.bf16.mxu0 0
    %1343 = vmatpush1.bf16.msra.mxu0 %v1322
    %1344 = vmatprep.subr.bf16.mxu0 0
    %1345 = vmatpush1.bf16.msra.mxu0 %v1323
    %1346 = vmatprep.subr.bf16.mxu0 0
    %1347 = vmatpush1.bf16.msra.mxu0 %v1324
    %1348 = vmatprep.subr.bf16.mxu0 0
    %1349 = vmatpush1.bf16.msra.mxu0 %v1325
    %1350 = vmatprep.subr.bf16.mxu0 0
    %1351 = vmatpush1.bf16.msra.mxu0 0
    %1352 = vmatprep.subr.bf16.mxu0 0
    %1353 = vmatpush1.bf16.msra.mxu0 0
    %1354 = vmatprep.subr.bf16.mxu0 0
    %1355 = vmatpush1.bf16.msra.mxu0 0
    %1356 = vmatprep.subr.bf16.mxu0 0
    %1357 = vmatpush1.bf16.msra.mxu0 0
    %1358 = vmatprep.subr.bf16.mxu0 0
    %1359 = vmatpush1.bf16.msra.mxu0 0
    %1360 = vmatprep.subr.bf16.mxu0 0
    %1361 = vmatpush1.bf16.msra.mxu0 0
    %1362 = vmatprep.subr.bf16.mxu0 0
    %1363 = vmatpush1.bf16.msra.mxu0 0
    %1364 = vmatprep.subr.bf16.mxu0 0
    %1365 = vmatpush1.bf16.msra.mxu0 0
    %1366 = vmatprep.mubr.bf16.mxu0 0
    %1367 = vmatmul.mubr.bf16.gmra.mrb[0].mxu0 %v1264
    %v1368 = vpop.f32.mrb[0].mxu0
    %v1369 = vadd.f32 %v1285, %v1368
    %v1370 = vpop.f32.mrb[0].mxu0
    %v1371 = vpop.f32.mrb[0].mxu0
    %v1372 = vpop.f32.mrb[0].mxu0
    %1373 = vdwg.mxu0
    %v1374 = vmax.f32 %v1369, 0.0
    %v1375 = vpack.c.bf16 %v1374, %v1374
    %v1376 = vld [vmem:[#allocation8] sm:$0xf]
    %v1377 = vld [vmem:[#allocation8 + $0x4] sm:$0xf]
    %v1378 = vld [vmem:[#allocation8 + $0x8] sm:$0xf]
    %v1379 = vld [vmem:[#allocation8 + $0xc] sm:$0xf]
    %v1380 = vld [vmem:[#allocation8 + $0x10] sm:$0xf]
    %v1381 = vld [vmem:[#allocation8 + $0x14] sm:$0xf]
    %v1382 = vld [vmem:[#allocation8 + $0x18] sm:$0xf]
    %v1383 = vld [vmem:[#allocation8 + $0x1c] sm:$0xf]
    %v1384 = vld [vmem:[#allocation8 + $0x20] sm:$0xf]
    %v1385 = vld [vmem:[#allocation8 + $0x24] sm:$0xf]
    %v1386 = vld [vmem:[#allocation8 + $0x28] sm:$0xf]
    %v1387 = vld [vmem:[#allocation8 + $0x2c] sm:$0xf]
    %v1388 = vld [vmem:[#allocation8 + $0x30] sm:$0xf]
    %v1389 = vld [vmem:[#allocation8 + $0x34] sm:$0xf]
    %v1390 = vld [vmem:[#allocation8 + $0x38] sm:$0xf]
    %v1391 = vld [vmem:[#allocation8 + $0x3c] sm:$0xf]
    %v1392 = vld [vmem:[%s5] sm:$0x1]
    %v1394 = vlaneseq
    %v1395 = vshrl.u32 %v1394, 7
    %v1396 = vsub.s32 0, %v1395
    %v1397 = vrot.slane %v1392, %v1396
    %v1415 = vunpack.c.l.b16 %v1376
    %v1416 = vunpack.c.l.b16 %v1377
    %v1417 = vunpack.c.l.b16 %v1378
    %v1418 = vunpack.c.l.b16 %v1379
    %v1419 = vunpack.c.l.b16 %v1380
    %v1420 = vunpack.c.l.b16 %v1381
    %v1421 = vunpack.c.l.b16 %v1382
    %v1422 = vunpack.c.l.b16 %v1383
    %v1423 = vunpack.c.l.b16 %v1384
    %v1424 = vunpack.c.l.b16 %v1385
    %v1425 = vunpack.c.l.b16 %v1386
    %v1426 = vunpack.c.l.b16 %v1387
    %v1427 = vunpack.c.l.b16 %v1388
    %v1428 = vunpack.c.l.b16 %v1389
    %v1429 = vunpack.c.l.b16 %v1390
    %v1430 = vunpack.c.l.b16 %v1391
    %v1431 = vpack.c.b16 %v1416, %v1415
    %v1432 = vpack.c.b16 %v1418, %v1417
    %v1433 = vpack.c.b16 %v1420, %v1419
    %v1434 = vpack.c.b16 %v1422, %v1421
    %v1435 = vpack.c.b16 %v1424, %v1423
    %v1436 = vpack.c.b16 %v1426, %v1425
    %v1437 = vpack.c.b16 %v1428, %v1427
    %v1438 = vpack.c.b16 %v1430, %v1429
    %1447 = vmatprep.subr.bf16.mxu0 0
    %1448 = vmatpush1.bf16.msra.mxu0 %v1431
    %1449 = vmatprep.subr.bf16.mxu0 0
    %1450 = vmatpush1.bf16.msra.mxu0 %v1432
    %1451 = vmatprep.subr.bf16.mxu0 0
    %1452 = vmatpush1.bf16.msra.mxu0 %v1433
    %1453 = vmatprep.subr.bf16.mxu0 0
    %1454 = vmatpush1.bf16.msra.mxu0 %v1434
    %1455 = vmatprep.subr.bf16.mxu0 0
    %1456 = vmatpush1.bf16.msra.mxu0 %v1435
    %1457 = vmatprep.subr.bf16.mxu0 0
    %1458 = vmatpush1.bf16.msra.mxu0 %v1436
    %1459 = vmatprep.subr.bf16.mxu0 0
    %1460 = vmatpush1.bf16.msra.mxu0 %v1437
    %1461 = vmatprep.subr.bf16.mxu0 0
    %1462 = vmatpush1.bf16.msra.mxu0 %v1438
    %1463 = vmatprep.subr.bf16.mxu0 0
    %1464 = vmatpush1.bf16.msra.mxu0 0
    %1465 = vmatprep.subr.bf16.mxu0 0
    %1466 = vmatpush1.bf16.msra.mxu0 0
    %1467 = vmatprep.subr.bf16.mxu0 0
    %1468 = vmatpush1.bf16.msra.mxu0 0
    %1469 = vmatprep.subr.bf16.mxu0 0
    %1470 = vmatpush1.bf16.msra.mxu0 0
    %1471 = vmatprep.subr.bf16.mxu0 0
    %1472 = vmatpush1.bf16.msra.mxu0 0
    %1473 = vmatprep.subr.bf16.mxu0 0
    %1474 = vmatpush1.bf16.msra.mxu0 0
    %1475 = vmatprep.subr.bf16.mxu0 0
    %1476 = vmatpush1.bf16.msra.mxu0 0
    %1477 = vmatprep.subr.bf16.mxu0 0
    %1478 = vmatpush1.bf16.msra.mxu0 0
    %1479 = vmatprep.mubr.bf16.mxu0 0
    %1480 = vmatmul.mubr.bf16.gmra.mrb[0].mxu0 %v1375
    %v1481 = vpop.f32.mrb[0].mxu0
    %v1482 = vadd.f32 %v1397, %v1481
    %v1483 = vpop.f32.mrb[0].mxu0
    %v1484 = vpop.f32.mrb[0].mxu0
    %v1485 = vpop.f32.mrb[0].mxu0
    %1486 = vdwg.mxu0
    %1487 = vst [vmem:[#allocation11] sm:$0x3] %v1482
    // Predicated region
    $region46: #{embedding_net_forward.1} parent=1 // pred_check
      _
    $region47: #{embedding_net_forward.1} parent=1 // pred_check_branch
      %1489 = sbr.rel (0) target = $region49
    $region48: #{embedding_net_forward.1} parent=1 // pred_region
      %s1491 = ssub.s32 32, 32
      %1492 = vsyncadd [#allocation4], %s1491
      %s1494 = sshll.u32 [#allocation11], 4
      %s1495 = int_to_ptr.vmem [resolvable:$true] %s1494
      %1497 = dma.vmem_to_hbm [thread:$0]  %s1495, 32, %s6, [#allocation4]
    $region49: #{embedding_net_forward.1} parent=1 // pred_fallthru
      _
    // Predicated region
    $region50: #{embedding_net_forward.1} parent=1 // pred_check
      _
    $region51: #{embedding_net_forward.1} parent=1 // pred_check_branch
      %1499 = sbr.rel (0) target = $region53
    $region52: #{embedding_net_forward.1} parent=1 // pred_region
      %1500 = dma.done [#allocation4], 32
    $region53: #{embedding_net_forward.1} parent=1 // pred_fallthru
      _
    %1501 = vsyncpa [#allocation3], 1
    %1502 = vsyncpa [#allocation6], 1
    %1503 = vsyncpa [#allocation9], 1
    %1504 = vsyncpa [#allocation4], 1

</llo_original>
